<compile_context>
chip_gen: v6e
topology: v6e:2x2x1
jax: 0.10.0
libtpu: 0.0.40
codegen_flags: <defaults>
</compile_context>

<pallas_src>
import jax
import jax.numpy as jnp
from jax.experimental import pallas as pl
from jax.experimental.pallas import tpu as pltpu

_EPS = 1e-5          # nn.BatchNorm2d default
_SLOPE = 0.2         # LeakyReLU(0.2)
_VMEM_LIMIT = 32 * 1024 * 1024   # safe on v5e/v6e (128 MiB) and v7x (64 MiB)


def _cparams(semantics):
    return pltpu.CompilerParams(dimension_semantics=semantics,
                                vmem_limit_bytes=_VMEM_LIMIT)


# ------------------------------- kernels ------------------------------------

def _conv_act_kernel(w_ref, p_ref, o_ref):
    """conv-as-matmul (bf16 MXU, f32 acc) + LeakyReLU(0.2)."""
    y = jnp.dot(w_ref[...], p_ref[...], preferred_element_type=jnp.float32)
    y = jnp.maximum(y, _SLOPE * y)
    o_ref[...] = y.astype(o_ref.dtype)


def _conv_bn_act_kernel(w_ref, p_ref, bias_ref, g_ref, b_ref, o_ref):
    """conv + train-mode BatchNorm (batch stats over the lane/M axis) +
    LeakyReLU.  Single pass; BN affine folded into one scale/shift FMA."""
    y = jnp.dot(w_ref[...], p_ref[...], preferred_element_type=jnp.float32)
    y = y + bias_ref[...]                 # cancelled by mean subtraction; kept for fidelity
    mean = jnp.mean(y, axis=1, keepdims=True)
    var = jnp.mean(jnp.square(y - mean), axis=1, keepdims=True)
    scale = jax.lax.rsqrt(jnp.maximum(var, 0.0) + _EPS) * g_ref[...]
    shift = b_ref[...] - mean * scale
    out = y * scale + shift
    out = jnp.maximum(out, _SLOPE * out)
    o_ref[...] = out.astype(o_ref.dtype)


def _conv_bn_act_adv_kernel(w_ref, p_ref, bias_ref, g_ref, b_ref,
                            wadv_ref, gsel_ref, adv_ref):
    """l4 conv + BN + LeakyReLU fused with the last_adv 4x4 valid-conv head.
    The l4 feature map never leaves VMEM; only the (1, B) validity is stored."""
    y = jnp.dot(w_ref[...], p_ref[...], preferred_element_type=jnp.float32)
    y = y + bias_ref[...]
    mean = jnp.mean(y, axis=1, keepdims=True)
    var = jnp.mean(jnp.square(y - mean), axis=1, keepdims=True)
    scale = jax.lax.rsqrt(jnp.maximum(var, 0.0) + _EPS) * g_ref[...]
    shift = b_ref[...] - mean * scale
    out = y * scale + shift
    out = jnp.maximum(out, _SLOPE * out)                       # (Cout4, B*16) f32
    # adv head: weight the feature map, reduce over channels (sublane reduce),
    # then per-batch segment-sum via a tiny 0/1 selection matmul (no in-kernel
    # reshape / gather -> clean lowering).
    t = jnp.sum(out * wadv_ref[...], axis=0, keepdims=True)    # (1, B*16)
    adv_ref[...] = jnp.dot(t, gsel_ref[...],
                           preferred_element_type=jnp.float32)  # (1, B)


# ---------------------------- layer wrappers ---------------------------------

def _choose_tile_m(M, max_tile=4096):
    """Largest 128-multiple M-tile that divides M; prefers >=2 tiles when M is
    large enough so the 'parallel' grid axis can engage both v7x cores."""
    if M <= 128 or M % 128 != 0:
        return M
    tm = min(M, max_tile)
    if M > 1024:
        tm = min(tm, max(1024, M // 2))
    tm -= tm % 128
    tm = max(tm, 128)
    while M % tm:
        tm -= 128
    return max(tm, 128)


def _wmat(w_oikk):
    """PyTorch (Cout, Cin, KH, KW) -> (Cout, Cin*KH*KW); K-order (c, kh, kw)
    matches the channel-major im2col, so this is a pure reshape."""
    return w_oikk.reshape(w_oikk.shape[0], -1).astype(jnp.bfloat16)


def _conv_act_layer(patches, w_mat, out_dtype=jnp.bfloat16):
    K, M = patches.shape
    Cout = w_mat.shape[0]
    tm = _choose_tile_m(M)
    nm = M // tm
    return pl.pallas_call(
        _conv_act_kernel,
        out_shape=jax.ShapeDtypeStruct((Cout, M), out_dtype),
        grid=(nm,),
        in_specs=[pl.BlockSpec((Cout, K), lambda i: (0, 0)),
                  pl.BlockSpec((K, tm), lambda i: (0, i))],
        out_specs=pl.BlockSpec((Cout, tm), lambda i: (0, i)),
        compiler_params=_cparams(("parallel",)),
    )(w_mat, patches)


def _conv_bn_act_layer(patches, w_mat, bias, gamma, beta,
                       out_dtype=jnp.bfloat16):
    K, M = patches.shape
    Cout = w_mat.shape[0]
    bias2 = bias.reshape(Cout, 1).astype(jnp.float32)
    g2 = gamma.reshape(Cout, 1).astype(jnp.float32)
    b2 = beta.reshape(Cout, 1).astype(jnp.float32)
    return pl.pallas_call(
        _conv_bn_act_kernel,
        out_shape=jax.ShapeDtypeStruct((Cout, M), out_dtype),
        grid=(1,),
        in_specs=[pl.BlockSpec((Cout, K), lambda i: (0, 0)),
                  pl.BlockSpec((K, M), lambda i: (0, 0)),
                  pl.BlockSpec((Cout, 1), lambda i: (0, 0)),
                  pl.BlockSpec((Cout, 1), lambda i: (0, 0)),
                  pl.BlockSpec((Cout, 1), lambda i: (0, 0))],
        out_specs=pl.BlockSpec((Cout, M), lambda i: (0, 0)),
        compiler_params=_cparams(("arbitrary",)),
    )(w_mat, patches, bias2, g2, b2)


def _conv_bn_act_adv_layer(patches, w_mat, bias, gamma, beta,
                           wadv_tiled, gsel, batch):
    K, M = patches.shape
    Cout = w_mat.shape[0]
    bias2 = bias.reshape(Cout, 1).astype(jnp.float32)
    g2 = gamma.reshape(Cout, 1).astype(jnp.float32)
    b2 = beta.reshape(Cout, 1).astype(jnp.float32)
    return pl.pallas_call(
        _conv_bn_act_adv_kernel,
        out_shape=jax.ShapeDtypeStruct((1, batch), jnp.float32),
        grid=(1,),
        in_specs=[pl.BlockSpec((Cout, K), lambda i: (0, 0)),
                  pl.BlockSpec((K, M), lambda i: (0, 0)),
                  pl.BlockSpec((Cout, 1), lambda i: (0, 0)),
                  pl.BlockSpec((Cout, 1), lambda i: (0, 0)),
                  pl.BlockSpec((Cout, 1), lambda i: (0, 0)),
                  pl.BlockSpec((Cout, M), lambda i: (0, 0)),
                  pl.BlockSpec((M, batch), lambda i: (0, 0))],
        out_specs=pl.BlockSpec((1, batch), lambda i: (0, 0)),
        compiler_params=_cparams(("arbitrary",)),
    )(w_mat, patches, bias2, g2, b2, wadv_tiled, gsel)


# ------------------------------ JAX glue -------------------------------------

def _im2col_cm(a_cbhw, k, stride, pad):
    """Channel-major im2col: (C, B, H, W) -> (K, M) with K ordered (c, kh, kw)
    and M = B*Ho*Wo ordered (b, ho, wo).  No transposes, only pad/slice/stack."""
    if pad:
        a_cbhw = jnp.pad(a_cbhw, ((0, 0), (0, 0), (pad, pad), (pad, pad)))
    C, B, H, W = a_cbhw.shape
    Ho = (H - k) // stride + 1
    Wo = (W - k) // stride + 1
    taps = []
    for i in range(k):
        for j in range(k):
            taps.append(a_cbhw[:, :, i:i + stride * Ho:stride,
                               j:j + stride * Wo:stride])
    p = jnp.stack(taps, axis=1)                       # (C, k*k, B, Ho, Wo)
    return p.reshape(C * k * k, B * Ho * Wo), (B, Ho, Wo)


# ----------------------------- Discriminator --------------------------------

def init_params(key, conv_dim=8, channels=1):
    ks = jax.random.split(key, 8)

    def w(k, shape):
        return 0.05 * jax.random.normal(k, shape, jnp.float32)

    c = conv_dim
    return {
        # l1: Conv(channels->c, 4, 2, 1, bias=False) + LeakyReLU
        "w1": w(ks[0], (c, channels, 4, 4)),
        # l2: Conv(c->2c, 4, 2, 1, bias=False) + BN + LeakyReLU
        "w2": w(ks[1], (2 * c, c, 4, 4)),
        "g2": jnp.ones((2 * c,), jnp.float32),
        "b2": jnp.zeros((2 * c,), jnp.float32),
        # l3: Conv(2c->4c, 4, 2, 1, bias=True) + BN + LeakyReLU
        "w3": w(ks[2], (4 * c, 2 * c, 4, 4)),
        "bias3": 0.05 * jax.random.normal(ks[3], (4 * c,), jnp.float32),
        "g3": jnp.ones((4 * c,), jnp.float32),
        "b3": jnp.zeros((4 * c,), jnp.float32),
        # l4: Conv(4c->8c, 4, 2, 1, bias=True) + BN + LeakyReLU
        "w4": w(ks[4], (8 * c, 4 * c, 4, 4)),
        "bias4": 0.05 * jax.random.normal(ks[5], (8 * c,), jnp.float32),
        "g4": jnp.ones((8 * c,), jnp.float32),
        "b4": jnp.zeros((8 * c,), jnp.float32),
        # last_adv: Conv(8c->1, 4, 1, 0, bias=False)
        "w_adv": w(ks[6], (1, 8 * c, 4, 4)),
    }


def discriminator_forward(params, x_nchw):
    c1 = params["w1"].shape[0]
    c2 = params["w2"].shape[0]
    c3 = params["w3"].shape[0]
    c4 = params["w4"].shape[0]

    # NCHW -> channel-major (C, B, H, W); the only transpose in the pipeline.
    a = jnp.transpose(x_nchw, (1, 0, 2, 3)).astype(jnp.bfloat16)

    # l1: conv + LeakyReLU (no BN) -- tiled/"parallel" over M
    p, (B, Ho, Wo) = _im2col_cm(a, 4, 2, 1)
    a = _conv_act_layer(p, _wmat(params["w1"])).reshape(c1, B, Ho, Wo)

    # l2: conv (bias=False) + BN + LeakyReLU, single fused pass
    p, (B, Ho, Wo) = _im2col_cm(a, 4, 2, 1)
    zeros2 = jnp.zeros((c2,), jnp.float32)
    a = _conv_bn_act_layer(p, _wmat(params["w2"]), zeros2,
                           params["g2"], params["b2"]).reshape(c2, B, Ho, Wo)

    # l3: conv (+bias) + BN + LeakyReLU, single fused pass
    p, (B, Ho, Wo) = _im2col_cm(a, 4, 2, 1)
    a = _conv_bn_act_layer(p, _wmat(params["w3"]), params["bias3"],
                           params["g3"], params["b3"]).reshape(c3, B, Ho, Wo)

    # l4: conv (+bias) + BN + LeakyReLU + last_adv head, all in one kernel
    p, (B, Ho, Wo) = _im2col_cm(a, 4, 2, 1)
    assert Ho == 4 and Wo == 4, "image_size must be 64 (4x4 map before last_adv)"
    wadv_tiled = jnp.tile(params["w_adv"].reshape(c4, Ho * Wo),
                          (1, B)).astype(jnp.float32)             # (c4, B*16)
    gsel = jnp.repeat(jnp.eye(B, dtype=jnp.float32), Ho * Wo, axis=0)  # (B*16, B)
    adv = _conv_bn_act_adv_layer(p, _wmat(params["w4"]), params["bias4"],
                                 params["g4"], params["b4"],
                                 wadv_tiled, gsel, B)             # (1, B)

    # torch: validity (B,1,1,1).squeeze() -> (B,)
    return jnp.squeeze(adv)


# --------------------------------- main --------------------------------------

if __name__ == "__main__":
    key = jax.random.PRNGKey(0)
    pkey, xkey = jax.random.split(key)

    # image_size must be 64 so the four stride-2 convs + final 4x4 valid conv
    # produce a 1x1 map, exactly as in the PyTorch module; conv_dim kept small.
    B, C, IMG, CONV_DIM = 2, 1, 64, 8

    params = init_params(pkey, conv_dim=CONV_DIM, channels=C)
    x = jax.random.normal(xkey, (B, C, IMG, IMG), jnp.float32)

    fwd = jax.jit(discriminator_forward)
    validity = fwd(params, x)
    jax.block_until_ready(validity)

    assert validity.shape == (B,), f"unexpected output shape {validity.shape}"
    assert bool(jnp.all(jnp.isfinite(validity)))
    print("KERNEL_OK")
</pallas_src>

<mosaic_0001>
module attributes {stable_mosaic.version = 11 : i64} {
  func.func @_conv_act_kernel(%arg0: i32, %arg1: memref<8x16xbf16, #tpu.memory_space<vmem>>, %arg2: memref<16x1024xbf16, #tpu.memory_space<vmem>>, %arg3: memref<8x1024xbf16, #tpu.memory_space<vmem>>) attributes {dimension_semantics = [#tpu.dimension_semantics<parallel>], iteration_bounds = array<i64: 2>, scalar_prefetch = 0 : i64, scratch_operands = 0 : i64, tpu.core_type = #tpu.core_type<tc>, window_params = [{pipeline_mode = #tpu.pipeline_mode<synchronous>, transform_indices = @transform_0, window_bounds = array<i64: 8, 16>}, {transform_indices = @transform_1, window_bounds = array<i64: 16, 1024>}, {transform_indices = @transform_2, window_bounds = array<i64: 8, 1024>}]} {
    %c0 = arith.constant 0 : index
    %c0_0 = arith.constant 0 : index
    %0 = vector.load %arg1[%c0, %c0_0] : memref<8x16xbf16, #tpu.memory_space<vmem>>, vector<8x16xbf16>
    %c0_1 = arith.constant 0 : index
    %c0_2 = arith.constant 0 : index
    %1 = vector.load %arg2[%c0_1, %c0_2] : memref<16x1024xbf16, #tpu.memory_space<vmem>>, vector<16x1024xbf16>
    %cst = arith.constant dense<0.000000e+00> : vector<8x1024xf32>
    %2 = tpu.matmul %0, %1, %cst {dimension_numbers = #tpu.dot_dimension_numbers<[1], [0], [0], [1], [0, 0, 1, 1], [], []>} : vector<8x16xbf16>, vector<16x1024xbf16>, vector<8x1024xf32> -> vector<8x1024xf32>
    %cst_3 = arith.constant 2.000000e-01 : f32
    %3 = vector.broadcast %cst_3 : f32 to vector<8x1024xf32>
    %4 = arith.mulf %3, %2 : vector<8x1024xf32>
    %5 = arith.maximumf %2, %4 : vector<8x1024xf32>
    %6 = arith.truncf %5 : vector<8x1024xf32> to vector<8x1024xbf16>
    %c0_4 = arith.constant 0 : index
    %c0_5 = arith.constant 0 : index
    %7 = vector.load %arg3[%c0_4, %c0_5] : memref<8x1024xbf16, #tpu.memory_space<vmem>>, vector<8x1024xbf16>
    tpu.vector_store %arg3[%c0_4, %c0_5], %6 {strides = array<i32>} : memref<8x1024xbf16, #tpu.memory_space<vmem>>, vector<8x1024xbf16>,
    return
  }
  func.func @transform_0(%arg0: i32) -> (i32, i32) {
    %c0_i32 = arith.constant 0 : i32
    %c0_i32_0 = arith.constant 0 : i32
    %c0_i32_1 = arith.constant 0 : i32
    return %c0_i32, %c0_i32_0 : i32, i32
  }
  func.func @transform_1(%arg0: i32) -> (i32, i32) {
    %c0_i32 = arith.constant 0 : i32
    %c0_i32_0 = arith.constant 0 : i32
    return %c0_i32, %arg0 : i32, i32
  }
  func.func @transform_2(%arg0: i32) -> (i32, i32) {
    %c0_i32 = arith.constant 0 : i32
    %c0_i32_0 = arith.constant 0 : i32
    return %c0_i32, %arg0 : i32, i32
  }
}

module attributes {stable_mosaic.version = 11 : i64} {
  func.func @_conv_bn_act_kernel(%arg0: i32, %arg1: memref<16x128xbf16, #tpu.memory_space<vmem>>, %arg2: memref<128x512xbf16, #tpu.memory_space<vmem>>, %arg3: memref<16x1xf32, #tpu.memory_space<vmem>>, %arg4: memref<16x1xf32, #tpu.memory_space<vmem>>, %arg5: memref<16x1xf32, #tpu.memory_space<vmem>>, %arg6: memref<16x512xbf16, #tpu.memory_space<vmem>>) attributes {dimension_semantics = [#tpu.dimension_semantics<arbitrary>], iteration_bounds = array<i64: 1>, scalar_prefetch = 0 : i64, scratch_operands = 0 : i64, tpu.core_type = #tpu.core_type<tc>, window_params = [{pipeline_mode = #tpu.pipeline_mode<synchronous>, transform_indices = @transform_0, window_bounds = array<i64: 16, 128>}, {pipeline_mode = #tpu.pipeline_mode<synchronous>, transform_indices = @transform_1, window_bounds = array<i64: 128, 512>}, {pipeline_mode = #tpu.pipeline_mode<synchronous>, transform_indices = @transform_2, window_bounds = array<i64: 16, 1>}, {pipeline_mode = #tpu.pipeline_mode<synchronous>, transform_indices = @transform_3, window_bounds = array<i64: 16, 1>}, {pipeline_mode = #tpu.pipeline_mode<synchronous>, transform_indices = @transform_4, window_bounds = array<i64: 16, 1>}, {pipeline_mode = #tpu.pipeline_mode<synchronous>, transform_indices = @transform_5, window_bounds = array<i64: 16, 512>}]} {
    %c0 = arith.constant 0 : index
    %c0_0 = arith.constant 0 : index
    %0 = vector.load %arg1[%c0, %c0_0] : memref<16x128xbf16, #tpu.memory_space<vmem>>, vector<16x128xbf16>
    %c0_1 = arith.constant 0 : index
    %c0_2 = arith.constant 0 : index
    %1 = vector.load %arg2[%c0_1, %c0_2] : memref<128x512xbf16, #tpu.memory_space<vmem>>, vector<128x512xbf16>
    %cst = arith.constant dense<0.000000e+00> : vector<16x512xf32>
    %2 = tpu.matmul %0, %1, %cst {dimension_numbers = #tpu.dot_dimension_numbers<[1], [0], [0], [1], [0, 0, 1, 1], [], []>} : vector<16x128xbf16>, vector<128x512xbf16>, vector<16x512xf32> -> vector<16x512xf32>
    %c0_3 = arith.constant 0 : index
    %c0_4 = arith.constant 0 : index
    %3 = vector.load %arg3[%c0_3, %c0_4] : memref<16x1xf32, #tpu.memory_space<vmem>>, vector<16x1xf32>
    %4 = vector.broadcast %3 : vector<16x1xf32> to vector<16x512xf32>
    %5 = arith.addf %2, %4 : vector<16x512xf32>
    %cst_5 = arith.constant dense<0.000000e+00> : vector<16xf32>
    %6 = vector.multi_reduction <add>, %5, %cst_5 [1] : vector<16x512xf32> to vector<16xf32>
    %7 = vector.shape_cast %6 : vector<16xf32> to vector<16x1xf32>
    %cst_6 = arith.constant 5.120000e+02 : f32
    %8 = vector.broadcast %cst_6 : f32 to vector<16x1xf32>
    %9 = arith.divf %7, %8 : vector<16x1xf32>
    %10 = vector.broadcast %9 : vector<16x1xf32> to vector<16x512xf32>
    %11 = arith.subf %5, %10 : vector<16x512xf32>
    %12 = arith.mulf %11, %11 : vector<16x512xf32>
    %cst_7 = arith.constant dense<0.000000e+00> : vector<16xf32>
    %13 = vector.multi_reduction <add>, %12, %cst_7 [1] : vector<16x512xf32> to vector<16xf32>
    %14 = vector.shape_cast %13 : vector<16xf32> to vector<16x1xf32>
    %cst_8 = arith.constant 5.120000e+02 : f32
    %15 = vector.broadcast %cst_8 : f32 to vector<16x1xf32>
    %16 = arith.divf %14, %15 : vector<16x1xf32>
    %cst_9 = arith.constant 0.000000e+00 : f32
    %17 = vector.broadcast %cst_9 : f32 to vector<16x1xf32>
    %18 = arith.maximumf %16, %17 : vector<16x1xf32>
    %cst_10 = arith.constant 9.99999974E-6 : f32
    %19 = vector.broadcast %cst_10 : f32 to vector<16x1xf32>
    %20 = arith.addf %18, %19 : vector<16x1xf32>
    %21 = math.rsqrt %20 : vector<16x1xf32>
    %c0_11 = arith.constant 0 : index
    %c0_12 = arith.constant 0 : index
    %22 = vector.load %arg4[%c0_11, %c0_12] : memref<16x1xf32, #tpu.memory_space<vmem>>, vector<16x1xf32>
    %23 = arith.mulf %21, %22 : vector<16x1xf32>
    %c0_13 = arith.constant 0 : index
    %c0_14 = arith.constant 0 : index
    %24 = vector.load %arg5[%c0_13, %c0_14] : memref<16x1xf32, #tpu.memory_space<vmem>>, vector<16x1xf32>
    %25 = arith.mulf %9, %23 : vector<16x1xf32>
    %26 = arith.subf %24, %25 : vector<16x1xf32>
    %27 = vector.broadcast %23 : vector<16x1xf32> to vector<16x512xf32>
    %28 = arith.mulf %5, %27 : vector<16x512xf32>
    %29 = vector.broadcast %26 : vector<16x1xf32> to vector<16x512xf32>
    %30 = arith.addf %28, %29 : vector<16x512xf32>
    %cst_15 = arith.constant 2.000000e-01 : f32
    %31 = vector.broadcast %cst_15 : f32 to vector<16x512xf32>
    %32 = arith.mulf %31, %30 : vector<16x512xf32>
    %33 = arith.maximumf %30, %32 : vector<16x512xf32>
    %34 = arith.truncf %33 : vector<16x512xf32> to vector<16x512xbf16>
    %c0_16 = arith.constant 0 : index
    %c0_17 = arith.constant 0 : index
    %35 = vector.load %arg6[%c0_16, %c0_17] : memref<16x512xbf16, #tpu.memory_space<vmem>>, vector<16x512xbf16>
    tpu.vector_store %arg6[%c0_16, %c0_17], %34 {strides = array<i32>} : memref<16x512xbf16, #tpu.memory_space<vmem>>, vector<16x512xbf16>,
    return
  }
  func.func @transform_0(%arg0: i32) -> (i32, i32) {
    %c0_i32 = arith.constant 0 : i32
    %c0_i32_0 = arith.constant 0 : i32
    %c0_i32_1 = arith.constant 0 : i32
    return %c0_i32, %c0_i32_0 : i32, i32
  }
  func.func @transform_1(%arg0: i32) -> (i32, i32) {
    %c0_i32 = arith.constant 0 : i32
    %c0_i32_0 = arith.constant 0 : i32
    %c0_i32_1 = arith.constant 0 : i32
    return %c0_i32, %c0_i32_0 : i32, i32
  }
  func.func @transform_2(%arg0: i32) -> (i32, i32) {
    %c0_i32 = arith.constant 0 : i32
    %c0_i32_0 = arith.constant 0 : i32
    %c0_i32_1 = arith.constant 0 : i32
    return %c0_i32, %c0_i32_0 : i32, i32
  }
  func.func @transform_3(%arg0: i32) -> (i32, i32) {
    %c0_i32 = arith.constant 0 : i32
    %c0_i32_0 = arith.constant 0 : i32
    %c0_i32_1 = arith.constant 0 : i32
    return %c0_i32, %c0_i32_0 : i32, i32
  }
  func.func @transform_4(%arg0: i32) -> (i32, i32) {
    %c0_i32 = arith.constant 0 : i32
    %c0_i32_0 = arith.constant 0 : i32
    %c0_i32_1 = arith.constant 0 : i32
    return %c0_i32, %c0_i32_0 : i32, i32
  }
  func.func @transform_5(%arg0: i32) -> (i32, i32) {
    %c0_i32 = arith.constant 0 : i32
    %c0_i32_0 = arith.constant 0 : i32
    %c0_i32_1 = arith.constant 0 : i32
    return %c0_i32, %c0_i32_0 : i32, i32
  }
}

module attributes {stable_mosaic.version = 11 : i64} {
  func.func @_conv_bn_act_kernel(%arg0: i32, %arg1: memref<32x256xbf16, #tpu.memory_space<vmem>>, %arg2: memref<256x128xbf16, #tpu.memory_space<vmem>>, %arg3: memref<32x1xf32, #tpu.memory_space<vmem>>, %arg4: memref<32x1xf32, #tpu.memory_space<vmem>>, %arg5: memref<32x1xf32, #tpu.memory_space<vmem>>, %arg6: memref<32x128xbf16, #tpu.memory_space<vmem>>) attributes {dimension_semantics = [#tpu.dimension_semantics<arbitrary>], iteration_bounds = array<i64: 1>, scalar_prefetch = 0 : i64, scratch_operands = 0 : i64, tpu.core_type = #tpu.core_type<tc>, window_params = [{pipeline_mode = #tpu.pipeline_mode<synchronous>, transform_indices = @transform_0, window_bounds = array<i64: 32, 256>}, {pipeline_mode = #tpu.pipeline_mode<synchronous>, transform_indices = @transform_1, window_bounds = array<i64: 256, 128>}, {pipeline_mode = #tpu.pipeline_mode<synchronous>, transform_indices = @transform_2, window_bounds = array<i64: 32, 1>}, {pipeline_mode = #tpu.pipeline_mode<synchronous>, transform_indices = @transform_3, window_bounds = array<i64: 32, 1>}, {pipeline_mode = #tpu.pipeline_mode<synchronous>, transform_indices = @transform_4, window_bounds = array<i64: 32, 1>}, {pipeline_mode = #tpu.pipeline_mode<synchronous>, transform_indices = @transform_5, window_bounds = array<i64: 32, 128>}]} {
    %c0 = arith.constant 0 : index
    %c0_0 = arith.constant 0 : index
    %0 = vector.load %arg1[%c0, %c0_0] : memref<32x256xbf16, #tpu.memory_space<vmem>>, vector<32x256xbf16>
    %c0_1 = arith.constant 0 : index
    %c0_2 = arith.constant 0 : index
    %1 = vector.load %arg2[%c0_1, %c0_2] : memref<256x128xbf16, #tpu.memory_space<vmem>>, vector<256x128xbf16>
    %cst = arith.constant dense<0.000000e+00> : vector<32x128xf32>
    %2 = tpu.matmul %0, %1, %cst {dimension_numbers = #tpu.dot_dimension_numbers<[1], [0], [0], [1], [0, 0, 1, 1], [], []>} : vector<32x256xbf16>, vector<256x128xbf16>, vector<32x128xf32> -> vector<32x128xf32>
    %c0_3 = arith.constant 0 : index
    %c0_4 = arith.constant 0 : index
    %3 = vector.load %arg3[%c0_3, %c0_4] : memref<32x1xf32, #tpu.memory_space<vmem>>, vector<32x1xf32>
    %4 = vector.broadcast %3 : vector<32x1xf32> to vector<32x128xf32>
    %5 = arith.addf %2, %4 : vector<32x128xf32>
    %cst_5 = arith.constant dense<0.000000e+00> : vector<32xf32>
    %6 = vector.multi_reduction <add>, %5, %cst_5 [1] : vector<32x128xf32> to vector<32xf32>
    %7 = vector.shape_cast %6 : vector<32xf32> to vector<32x1xf32>
    %cst_6 = arith.constant 1.280000e+02 : f32
    %8 = vector.broadcast %cst_6 : f32 to vector<32x1xf32>
    %9 = arith.divf %7, %8 : vector<32x1xf32>
    %10 = vector.broadcast %9 : vector<32x1xf32> to vector<32x128xf32>
    %11 = arith.subf %5, %10 : vector<32x128xf32>
    %12 = arith.mulf %11, %11 : vector<32x128xf32>
    %cst_7 = arith.constant dense<0.000000e+00> : vector<32xf32>
    %13 = vector.multi_reduction <add>, %12, %cst_7 [1] : vector<32x128xf32> to vector<32xf32>
    %14 = vector.shape_cast %13 : vector<32xf32> to vector<32x1xf32>
    %cst_8 = arith.constant 1.280000e+02 : f32
    %15 = vector.broadcast %cst_8 : f32 to vector<32x1xf32>
    %16 = arith.divf %14, %15 : vector<32x1xf32>
    %cst_9 = arith.constant 0.000000e+00 : f32
    %17 = vector.broadcast %cst_9 : f32 to vector<32x1xf32>
    %18 = arith.maximumf %16, %17 : vector<32x1xf32>
    %cst_10 = arith.constant 9.99999974E-6 : f32
    %19 = vector.broadcast %cst_10 : f32 to vector<32x1xf32>
    %20 = arith.addf %18, %19 : vector<32x1xf32>
    %21 = math.rsqrt %20 : vector<32x1xf32>
    %c0_11 = arith.constant 0 : index
    %c0_12 = arith.constant 0 : index
    %22 = vector.load %arg4[%c0_11, %c0_12] : memref<32x1xf32, #tpu.memory_space<vmem>>, vector<32x1xf32>
    %23 = arith.mulf %21, %22 : vector<32x1xf32>
    %c0_13 = arith.constant 0 : index
    %c0_14 = arith.constant 0 : index
    %24 = vector.load %arg5[%c0_13, %c0_14] : memref<32x1xf32, #tpu.memory_space<vmem>>, vector<32x1xf32>
    %25 = arith.mulf %9, %23 : vector<32x1xf32>
    %26 = arith.subf %24, %25 : vector<32x1xf32>
    %27 = vector.broadcast %23 : vector<32x1xf32> to vector<32x128xf32>
    %28 = arith.mulf %5, %27 : vector<32x128xf32>
    %29 = vector.broadcast %26 : vector<32x1xf32> to vector<32x128xf32>
    %30 = arith.addf %28, %29 : vector<32x128xf32>
    %cst_15 = arith.constant 2.000000e-01 : f32
    %31 = vector.broadcast %cst_15 : f32 to vector<32x128xf32>
    %32 = arith.mulf %31, %30 : vector<32x128xf32>
    %33 = arith.maximumf %30, %32 : vector<32x128xf32>
    %34 = arith.truncf %33 : vector<32x128xf32> to vector<32x128xbf16>
    %c0_16 = arith.constant 0 : index
    %c0_17 = arith.constant 0 : index
    %35 = vector.load %arg6[%c0_16, %c0_17] : memref<32x128xbf16, #tpu.memory_space<vmem>>, vector<32x128xbf16>
    tpu.vector_store %arg6[%c0_16, %c0_17], %34 {strides = array<i32>} : memref<32x128xbf16, #tpu.memory_space<vmem>>, vector<32x128xbf16>,
    return
  }
  func.func @transform_0(%arg0: i32) -> (i32, i32) {
    %c0_i32 = arith.constant 0 : i32
    %c0_i32_0 = arith.constant 0 : i32
    %c0_i32_1 = arith.constant 0 : i32
    return %c0_i32, %c0_i32_0 : i32, i32
  }
  func.func @transform_1(%arg0: i32) -> (i32, i32) {
    %c0_i32 = arith.constant 0 : i32
    %c0_i32_0 = arith.constant 0 : i32
    %c0_i32_1 = arith.constant 0 : i32
    return %c0_i32, %c0_i32_0 : i32, i32
  }
  func.func @transform_2(%arg0: i32) -> (i32, i32) {
    %c0_i32 = arith.constant 0 : i32
    %c0_i32_0 = arith.constant 0 : i32
    %c0_i32_1 = arith.constant 0 : i32
    return %c0_i32, %c0_i32_0 : i32, i32
  }
  func.func @transform_3(%arg0: i32) -> (i32, i32) {
    %c0_i32 = arith.constant 0 : i32
    %c0_i32_0 = arith.constant 0 : i32
    %c0_i32_1 = arith.constant 0 : i32
    return %c0_i32, %c0_i32_0 : i32, i32
  }
  func.func @transform_4(%arg0: i32) -> (i32, i32) {
    %c0_i32 = arith.constant 0 : i32
    %c0_i32_0 = arith.constant 0 : i32
    %c0_i32_1 = arith.constant 0 : i32
    return %c0_i32, %c0_i32_0 : i32, i32
  }
  func.func @transform_5(%arg0: i32) -> (i32, i32) {
    %c0_i32 = arith.constant 0 : i32
    %c0_i32_0 = arith.constant 0 : i32
    %c0_i32_1 = arith.constant 0 : i32
    return %c0_i32, %c0_i32_0 : i32, i32
  }
}

module attributes {stable_mosaic.version = 11 : i64} {
  func.func @_conv_bn_act_adv_kernel(%arg0: i32, %arg1: memref<64x512xbf16, #tpu.memory_space<vmem>>, %arg2: memref<512x32xbf16, #tpu.memory_space<vmem>>, %arg3: memref<64x1xf32, #tpu.memory_space<vmem>>, %arg4: memref<64x1xf32, #tpu.memory_space<vmem>>, %arg5: memref<64x1xf32, #tpu.memory_space<vmem>>, %arg6: memref<64x32xf32, #tpu.memory_space<vmem>>, %arg7: memref<32x2xf32, #tpu.memory_space<vmem>>, %arg8: memref<1x2xf32, #tpu.memory_space<vmem>>) attributes {dimension_semantics = [#tpu.dimension_semantics<arbitrary>], iteration_bounds = array<i64: 1>, scalar_prefetch = 0 : i64, scratch_operands = 0 : i64, tpu.core_type = #tpu.core_type<tc>, window_params = [{pipeline_mode = #tpu.pipeline_mode<synchronous>, transform_indices = @transform_0, window_bounds = array<i64: 64, 512>}, {pipeline_mode = #tpu.pipeline_mode<synchronous>, transform_indices = @transform_1, window_bounds = array<i64: 512, 32>}, {pipeline_mode = #tpu.pipeline_mode<synchronous>, transform_indices = @transform_2, window_bounds = array<i64: 64, 1>}, {pipeline_mode = #tpu.pipeline_mode<synchronous>, transform_indices = @transform_3, window_bounds = array<i64: 64, 1>}, {pipeline_mode = #tpu.pipeline_mode<synchronous>, transform_indices = @transform_4, window_bounds = array<i64: 64, 1>}, {pipeline_mode = #tpu.pipeline_mode<synchronous>, transform_indices = @transform_5, window_bounds = array<i64: 64, 32>}, {pipeline_mode = #tpu.pipeline_mode<synchronous>, transform_indices = @transform_6, window_bounds = array<i64: 32, 2>}, {pipeline_mode = #tpu.pipeline_mode<synchronous>, transform_indices = @transform_7, window_bounds = array<i64: 1, 2>}]} {
    %c0 = arith.constant 0 : index
    %c0_0 = arith.constant 0 : index
    %0 = vector.load %arg1[%c0, %c0_0] : memref<64x512xbf16, #tpu.memory_space<vmem>>, vector<64x512xbf16>
    %c0_1 = arith.constant 0 : index
    %c0_2 = arith.constant 0 : index
    %1 = vector.load %arg2[%c0_1, %c0_2] : memref<512x32xbf16, #tpu.memory_space<vmem>>, vector<512x32xbf16>
    %cst = arith.constant dense<0.000000e+00> : vector<64x32xf32>
    %2 = tpu.matmul %0, %1, %cst {dimension_numbers = #tpu.dot_dimension_numbers<[1], [0], [0], [1], [0, 0, 1, 1], [], []>} : vector<64x512xbf16>, vector<512x32xbf16>, vector<64x32xf32> -> vector<64x32xf32>
    %c0_3 = arith.constant 0 : index
    %c0_4 = arith.constant 0 : index
    %3 = vector.load %arg3[%c0_3, %c0_4] : memref<64x1xf32, #tpu.memory_space<vmem>>, vector<64x1xf32>
    %4 = vector.broadcast %3 : vector<64x1xf32> to vector<64x32xf32>
    %5 = arith.addf %2, %4 : vector<64x32xf32>
    %cst_5 = arith.constant dense<0.000000e+00> : vector<64xf32>
    %6 = vector.multi_reduction <add>, %5, %cst_5 [1] : vector<64x32xf32> to vector<64xf32>
    %7 = vector.shape_cast %6 : vector<64xf32> to vector<64x1xf32>
    %cst_6 = arith.constant 3.200000e+01 : f32
    %8 = vector.broadcast %cst_6 : f32 to vector<64x1xf32>
    %9 = arith.divf %7, %8 : vector<64x1xf32>
    %10 = vector.broadcast %9 : vector<64x1xf32> to vector<64x32xf32>
    %11 = arith.subf %5, %10 : vector<64x32xf32>
    %12 = arith.mulf %11, %11 : vector<64x32xf32>
    %cst_7 = arith.constant dense<0.000000e+00> : vector<64xf32>
    %13 = vector.multi_reduction <add>, %12, %cst_7 [1] : vector<64x32xf32> to vector<64xf32>
    %14 = vector.shape_cast %13 : vector<64xf32> to vector<64x1xf32>
    %cst_8 = arith.constant 3.200000e+01 : f32
    %15 = vector.broadcast %cst_8 : f32 to vector<64x1xf32>
    %16 = arith.divf %14, %15 : vector<64x1xf32>
    %cst_9 = arith.constant 0.000000e+00 : f32
    %17 = vector.broadcast %cst_9 : f32 to vector<64x1xf32>
    %18 = arith.maximumf %16, %17 : vector<64x1xf32>
    %cst_10 = arith.constant 9.99999974E-6 : f32
    %19 = vector.broadcast %cst_10 : f32 to vector<64x1xf32>
    %20 = arith.addf %18, %19 : vector<64x1xf32>
    %21 = math.rsqrt %20 : vector<64x1xf32>
    %c0_11 = arith.constant 0 : index
    %c0_12 = arith.constant 0 : index
    %22 = vector.load %arg4[%c0_11, %c0_12] : memref<64x1xf32, #tpu.memory_space<vmem>>, vector<64x1xf32>
    %23 = arith.mulf %21, %22 : vector<64x1xf32>
    %c0_13 = arith.constant 0 : index
    %c0_14 = arith.constant 0 : index
    %24 = vector.load %arg5[%c0_13, %c0_14] : memref<64x1xf32, #tpu.memory_space<vmem>>, vector<64x1xf32>
    %25 = arith.mulf %9, %23 : vector<64x1xf32>
    %26 = arith.subf %24, %25 : vector<64x1xf32>
    %27 = vector.broadcast %23 : vector<64x1xf32> to vector<64x32xf32>
    %28 = arith.mulf %5, %27 : vector<64x32xf32>
    %29 = vector.broadcast %26 : vector<64x1xf32> to vector<64x32xf32>
    %30 = arith.addf %28, %29 : vector<64x32xf32>
    %cst_15 = arith.constant 2.000000e-01 : f32
    %31 = vector.broadcast %cst_15 : f32 to vector<64x32xf32>
    %32 = arith.mulf %31, %30 : vector<64x32xf32>
    %33 = arith.maximumf %30, %32 : vector<64x32xf32>
    %c0_16 = arith.constant 0 : index
    %c0_17 = arith.constant 0 : index
    %34 = vector.load %arg6[%c0_16, %c0_17] : memref<64x32xf32, #tpu.memory_space<vmem>>, vector<64x32xf32>
    %35 = arith.mulf %33, %34 : vector<64x32xf32>
    %cst_18 = arith.constant dense<0.000000e+00> : vector<32xf32>
    %36 = vector.multi_reduction <add>, %35, %cst_18 [0] : vector<64x32xf32> to vector<32xf32>
    %37 = vector.shape_cast %36 : vector<32xf32> to vector<1x32xf32>
    %c0_19 = arith.constant 0 : index
    %c0_20 = arith.constant 0 : index
    %38 = vector.load %arg7[%c0_19, %c0_20] : memref<32x2xf32, #tpu.memory_space<vmem>>, vector<32x2xf32>
    %cst_21 = arith.constant dense<0.000000e+00> : vector<1x2xf32>
    %39 = tpu.matmul %37, %38, %cst_21 {dimension_numbers = #tpu.dot_dimension_numbers<[1], [0], [0], [1], [0, 0, 1, 1], [], []>} : vector<1x32xf32>, vector<32x2xf32>, vector<1x2xf32> -> vector<1x2xf32>
    %c0_22 = arith.constant 0 : index
    %c0_23 = arith.constant 0 : index
    %40 = vector.load %arg8[%c0_22, %c0_23] : memref<1x2xf32, #tpu.memory_space<vmem>>, vector<1x2xf32>
    tpu.vector_store %arg8[%c0_22, %c0_23], %39 {strides = array<i32>} : memref<1x2xf32, #tpu.memory_space<vmem>>, vector<1x2xf32>,
    return
  }
  func.func @transform_0(%arg0: i32) -> (i32, i32) {
    %c0_i32 = arith.constant 0 : i32
    %c0_i32_0 = arith.constant 0 : i32
    %c0_i32_1 = arith.constant 0 : i32
    return %c0_i32, %c0_i32_0 : i32, i32
  }
  func.func @transform_1(%arg0: i32) -> (i32, i32) {
    %c0_i32 = arith.constant 0 : i32
    %c0_i32_0 = arith.constant 0 : i32
    %c0_i32_1 = arith.constant 0 : i32
    return %c0_i32, %c0_i32_0 : i32, i32
  }
  func.func @transform_2(%arg0: i32) -> (i32, i32) {
    %c0_i32 = arith.constant 0 : i32
    %c0_i32_0 = arith.constant 0 : i32
    %c0_i32_1 = arith.constant 0 : i32
    return %c0_i32, %c0_i32_0 : i32, i32
  }
  func.func @transform_3(%arg0: i32) -> (i32, i32) {
    %c0_i32 = arith.constant 0 : i32
    %c0_i32_0 = arith.constant 0 : i32
    %c0_i32_1 = arith.constant 0 : i32
    return %c0_i32, %c0_i32_0 : i32, i32
  }
  func.func @transform_4(%arg0: i32) -> (i32, i32) {
    %c0_i32 = arith.constant 0 : i32
    %c0_i32_0 = arith.constant 0 : i32
    %c0_i32_1 = arith.constant 0 : i32
    return %c0_i32, %c0_i32_0 : i32, i32
  }
  func.func @transform_5(%arg0: i32) -> (i32, i32) {
    %c0_i32 = arith.constant 0 : i32
    %c0_i32_0 = arith.constant 0 : i32
    %c0_i32_1 = arith.constant 0 : i32
    return %c0_i32, %c0_i32_0 : i32, i32
  }
  func.func @transform_6(%arg0: i32) -> (i32, i32) {
    %c0_i32 = arith.constant 0 : i32
    %c0_i32_0 = arith.constant 0 : i32
    %c0_i32_1 = arith.constant 0 : i32
    return %c0_i32, %c0_i32_0 : i32, i32
  }
  func.func @transform_7(%arg0: i32) -> (i32, i32) {
    %c0_i32 = arith.constant 0 : i32
    %c0_i32_0 = arith.constant 0 : i32
    %c0_i32_1 = arith.constant 0 : i32
    return %c0_i32, %c0_i32_0 : i32, i32
  }
}

</mosaic_0001>

<llo_original>
// kernel: discriminator_forward.4
$region0: #{discriminator_forward.4}
  #allocation0 [shape = 'u32[]', space=smem, size = 0x4, offset = 0x4, fixed_abs, tag = 'smem constant byte address 0x4 - core index']
  #allocation1 [shape = 'u32[144,128]{1,0:T(1,128)}', space=vmem, size = 0x12000, scoped, tag = 'internal scratch']
  %s0 = inlined_call_operand.vmem [shape: bf16[8,16], index: 0, kind: input, shape index: {}]
  %s1 = inlined_call_operand.vmem [shape: bf16[16,2048], index: 1, kind: input, shape index: {}]
  %s2 = inlined_call_operand.vmem [shape: bf16[8,2048], index: 2, kind: output, shape index: {}]
  %s3 = sld [smem:[#allocation0]]
  $region64: #{discriminator_forward.4} parent=0
    _
  %s5 = ssub.s32 1, %s3
  %s6 = scalar_select 0, %s5, %s3
  $region1: #{discriminator_forward.4} parent=0
    #allocation2 [shape = 'u8[65536]{0}', space=vmem, size = 0x10000, scoped, tag = 'input window, operand 1']
    loop: start=0, step=1, limit=4
    $region2: #{discriminator_forward.4} parent=1 // loop_pre_header
      _
    $region3: #{discriminator_forward.4} parent=1 // loop_header
      %s8 = sphi 0, %s12
      %p9 = scmp.ge.s32.totalorder %s8, 4
      %s16 = sphi 0, %s16
      %s18 = sphi 0, %s16
      %s19 = sphi 0, %s18
      %s33 = sphi 0, %s19
      %s39 = sphi 0, %s41
      %s42 = sphi 0, %s39
      %s43 = sphi 0, %s42
      %s59 = sphi 0, %s43
      %s65 = sphi 0, %s67
      %s68 = sphi 0, %s65
      %s69 = sphi 0, %s68
      %s85 = sphi 0, %s69
    $region4: #{discriminator_forward.4} parent=1 // loop_header_branch
      %11 = sbr.rel (%p9) target = $region8
    $region5: #{discriminator_forward.4} parent=1 // loop_body
      %s13 = ssub.s32 %s8, 1
      %s14 = ssub.s32 %s8, 2
      %s15 = sadd.s32 %s8, 1
      %s17 = sadd.s32 %s16, 1
      %p20 = scmp.eq.s32.totalorder %s8, 1
      %p21 = scmp.ne.s32.totalorder %s16, %s18
      %p22 = scmp.eq.s32.totalorder %s8, 0
      %p23 = por %p21, %p22
      %p24 = scmp.ne.s32.totalorder %s16, %s18
      %p25 = scmp.eq.s32.totalorder %s13, 1
      %p26 = por %p24, %p25
      %p27 = scmp.ne.s32.totalorder %s18, %s19
      %p28 = scmp.eq.s32.totalorder %s13, 0
      %p29 = por %p27, %p28
      %p30 = scmp.ne.s32.totalorder %s18, %s19
      %p31 = scmp.eq.s32.totalorder %s14, 1
      %p32 = por %p30, %p31
      %p34 = scmp.ne.s32.totalorder %s19, %s33
      %p35 = scmp.eq.s32.totalorder %s14, 0
      %p36 = por %p34, %p35
      %s37 = ssub.s32 %s8, %s15
      %p38 = scmp.eq.s32.totalorder %s37, 0
      %s40 = sadd.s32 %s39, 1
      %s41 = scalar_select %p38, %s39, %s40
      %p44 = pneg %p38
      %p45 = scmp.eq.s32.totalorder %s8, 1
      %p46 = por %p44, %p45
      %p47 = scmp.ne.s32.totalorder %s39, %s42
      %p48 = scmp.eq.s32.totalorder %s8, 0
      %p49 = por %p47, %p48
      %p50 = scmp.ne.s32.totalorder %s39, %s42
      %p51 = scmp.eq.s32.totalorder %s13, 1
      %p52 = por %p50, %p51
      %p53 = scmp.ne.s32.totalorder %s42, %s43
      %p54 = scmp.eq.s32.totalorder %s13, 0
      %p55 = por %p53, %p54
      %p56 = scmp.ne.s32.totalorder %s42, %s43
      %p57 = scmp.eq.s32.totalorder %s14, 1
      %p58 = por %p56, %p57
      %p60 = scmp.ne.s32.totalorder %s43, %s59
      %p61 = scmp.eq.s32.totalorder %s14, 0
      %p62 = por %p60, %p61
      %s63 = ssub.s32 %s8, %s15
      %p64 = scmp.eq.s32.totalorder %s63, 0
      %s66 = sadd.s32 %s65, 1
      %s67 = scalar_select %p64, %s65, %s66
      %p70 = pneg %p64
      %p71 = scmp.eq.s32.totalorder %s8, 1
      %p72 = por %p70, %p71
      %p73 = scmp.ne.s32.totalorder %s65, %s68
      %p74 = scmp.eq.s32.totalorder %s8, 0
      %p75 = por %p73, %p74
      %p76 = scmp.ne.s32.totalorder %s65, %s68
      %p77 = scmp.eq.s32.totalorder %s13, 1
      %p78 = por %p76, %p77
      %p79 = scmp.ne.s32.totalorder %s68, %s69
      %p80 = scmp.eq.s32.totalorder %s13, 0
      %p81 = por %p79, %p80
      %p82 = scmp.ne.s32.totalorder %s68, %s69
      %p83 = scmp.eq.s32.totalorder %s14, 1
      %p84 = por %p82, %p83
      %p86 = scmp.ne.s32.totalorder %s69, %s85
      %p87 = scmp.eq.s32.totalorder %s14, 0
      %p88 = por %p86, %p87
      %p89 = scmp.le.s32.totalorder 1, %s8
      %p90 = scmp.lt.s32.totalorder %s8, 3
      %p91 = pnand %p89, %p90
      %p92 = pneg %p91
      // Predicated region
      $region9: #{discriminator_forward.4} parent=5 // pred_check
        _
      $region10: #{discriminator_forward.4} parent=5 // pred_check_branch
        %94 = sbr.rel (%p91) target = $region12
      $region11: #{discriminator_forward.4} parent=5 // pred_region
        %s95 = ssub.s32 %s8, 1
        // Predicated region
        $region13: #{discriminator_forward.4} parent=11 // pred_check
          %p96 = pneg %p29
        $region14: #{discriminator_forward.4} parent=11 // pred_check_branch
          %98 = sbr.rel (%p96) target = $region16
        $region15: #{discriminator_forward.4} parent=11 // pred_region
          _
        $region16: #{discriminator_forward.4} parent=11 // pred_fallthru
          _
      $region12: #{discriminator_forward.4} parent=5 // pred_fallthru
        _
      %p99 = scmp.lt.s32.totalorder %s8, 2
      // Predicated region
      $region17: #{discriminator_forward.4} parent=5 // pred_check
        %p100 = pneg %p99
      $region18: #{discriminator_forward.4} parent=5 // pred_check_branch
        %102 = sbr.rel (%p100) target = $region20
      $region19: #{discriminator_forward.4} parent=5 // pred_region
        // Predicated region
        $region21: #{discriminator_forward.4} parent=19 // pred_check
          %p103 = pneg %p49
        $region22: #{discriminator_forward.4} parent=19 // pred_check_branch
          %105 = sbr.rel (%p103) target = $region24
        $region23: #{discriminator_forward.4} parent=19 // pred_region
          %s106 = sand.u32 %s39, 1
          %s107 = sand.u32 %s39, 1
          %s108 = smul.addr %s107, 64
          %s109 = scalar_lea.vmem [#allocation2], %s108
          %s110 = smul.u32 8, %s8
          %s111 = smul.addr %s110, 4
          %s112 = scalar_lea.vmem %s1, %s111
          // Predicated region
          $region25: #{discriminator_forward.4} parent=23 // pred_check
            _
          $region26: #{discriminator_forward.4} parent=23 // pred_check_branch
            %114 = sbr.rel (0) target = $region28
          $region27: #{discriminator_forward.4} parent=23 // pred_region
            // Predicated region
            $region29: #{discriminator_forward.4} parent=27 // pred_check
              _
            $region30: #{discriminator_forward.4} parent=27 // pred_check_branch
              %116 = sbr.rel (0) target = $region32
            $region31: #{discriminator_forward.4} parent=27 // pred_region
              loop: start=0, step=1, limit=1
              $region33: #{discriminator_forward.4} parent=31 // loop_pre_header
                _
              $region34: #{discriminator_forward.4} parent=31 // loop_header
                %s118 = sphi 0, %s122
                %p119 = scmp.ge.s32.totalorder %s118, 1
                %s123 = sphi %s112, %s112
                %s124 = sphi %s109, %s109
              $region35: #{discriminator_forward.4} parent=31 // loop_header_branch
                %121 = sbr.rel (%p119) target = $region39
              $region36: #{discriminator_forward.4} parent=31 // loop_body
                %v125 = vld [vmem:[%s123] sm:$0xff]
                %126 = vst [vmem:[%s124] sm:$0xff] %v125
                %v127 = vld [vmem:[%s123 + $0x8] sm:$0xff]
                %128 = vst [vmem:[%s124 + $0x8] sm:$0xff] %v127
                %v129 = vld [vmem:[%s123 + $0x10] sm:$0xff]
                %130 = vst [vmem:[%s124 + $0x10] sm:$0xff] %v129
                %v131 = vld [vmem:[%s123 + $0x18] sm:$0xff]
                %132 = vst [vmem:[%s124 + $0x18] sm:$0xff] %v131
                %v133 = vld [vmem:[%s123 + $0x40] sm:$0xff]
                %134 = vst [vmem:[%s124 + $0x20] sm:$0xff] %v133
                %v135 = vld [vmem:[%s123 + $0x48] sm:$0xff]
                %136 = vst [vmem:[%s124 + $0x28] sm:$0xff] %v135
                %v137 = vld [vmem:[%s123 + $0x50] sm:$0xff]
                %138 = vst [vmem:[%s124 + $0x30] sm:$0xff] %v137
                %v139 = vld [vmem:[%s123 + $0x58] sm:$0xff]
                %140 = vst [vmem:[%s124 + $0x38] sm:$0xff] %v139
              $region37: #{discriminator_forward.4} parent=31 // loop_footer
                %s122 = sadd.s32 1, %s118
              $region38: #{discriminator_forward.4} parent=31 // loop_footer_branch
                %117 = sbr.rel target = $region34
              $region39: #{discriminator_forward.4} parent=31 // loop_exit
                _
            $region32: #{discriminator_forward.4} parent=27 // pred_fallthru
              _
            // Predicated region
            $region40: #{discriminator_forward.4} parent=27 // pred_check
              _
            $region41: #{discriminator_forward.4} parent=27 // pred_check_branch
              %142 = sbr.rel target = $region43
            $region42: #{discriminator_forward.4} parent=27 // pred_region
              _
            $region43: #{discriminator_forward.4} parent=27 // pred_fallthru
              _
          $region28: #{discriminator_forward.4} parent=23 // pred_fallthru
            _
          %143 = vnop
        $region24: #{discriminator_forward.4} parent=19 // pred_fallthru
          _
      $region20: #{discriminator_forward.4} parent=5 // pred_fallthru
        _
      %p144 = scmp.le.s32.totalorder 1, %s8
      %p145 = scmp.lt.s32.totalorder %s8, 3
      %p146 = pnand %p144, %p145
      %p147 = pneg %p146
      // Predicated region
      $region44: #{discriminator_forward.4} parent=5 // pred_check
        _
      $region45: #{discriminator_forward.4} parent=5 // pred_check_branch
        %149 = sbr.rel (%p146) target = $region47
      $region46: #{discriminator_forward.4} parent=5 // pred_region
        %s150 = ssub.s32 %s8, 1
        %s151 = sand.u32 %s42, 1
        %s152 = sand.u32 %s42, 1
        %s153 = smul.addr %s152, 64
        %s154 = scalar_lea.vmem [#allocation2], %s153
        // Predicated region
        $region48: #{discriminator_forward.4} parent=46 // pred_check
          %p155 = pneg %p55
        $region49: #{discriminator_forward.4} parent=46 // pred_check_branch
          %157 = sbr.rel (%p155) target = $region51
        $region50: #{discriminator_forward.4} parent=46 // pred_region
          _
        $region51: #{discriminator_forward.4} parent=46 // pred_fallthru
          _
        %p158 = pneg %p29
        %p159 = pneg %p26
        %s160 = sand.u32 %s42, 1
        %s161 = sand.u32 %s42, 1
        %s162 = smul.addr %s161, 64
        %s163 = scalar_lea.vmem [#allocation2], %s162
        %p164 = pneg %p55
        %p165 = pneg %p52
        %p166 = pneg %p81
        %p167 = pneg %p78
        %s168 = smul.u32 8, %s13
        %p169 = scmp.lt.s32.totalorder %s168, 15
        %s170 = scalar_select %p169, %s168, 15
        %s171 = smul.addr %s170, 4
        %s172 = scalar_lea.vmem %s2, %s171
        %s173 = smul.u32 8, %s13
        %s174 = smul.u32 8, %s13
        %p175 = scmp.lt.s32.totalorder %s174, 15
        %s176 = scalar_select %p175, %s174, 15
        %s177 = smul.addr %s176, 4
        %s178 = scalar_lea.vmem %s2, %s177
        %s179 = smul.u32 8, %s13
        %v181 = vld [vmem:[%s0] sm:$0xf]
        %v182 = vld [vmem:[%s154] sm:$0xff]
        %v183 = vld [vmem:[%s154 + $0x8] sm:$0xff]
        %v184 = vld [vmem:[%s154 + $0x10] sm:$0xff]
        %v185 = vld [vmem:[%s154 + $0x18] sm:$0xff]
        %v186 = vld [vmem:[%s154 + $0x20] sm:$0xff]
        %v187 = vld [vmem:[%s154 + $0x28] sm:$0xff]
        %v188 = vld [vmem:[%s154 + $0x30] sm:$0xff]
        %v189 = vld [vmem:[%s154 + $0x38] sm:$0xff]
        %v198 = vunpack.c.l.b16 %v182
        %v199 = vunpack.c.h.b16 %v182
        %v200 = vunpack.c.l.b16 %v183
        %v201 = vunpack.c.h.b16 %v183
        %v202 = vunpack.c.l.b16 %v184
        %v203 = vunpack.c.h.b16 %v184
        %v204 = vunpack.c.l.b16 %v185
        %v205 = vunpack.c.h.b16 %v185
        %v206 = vunpack.c.l.b16 %v186
        %v207 = vunpack.c.h.b16 %v186
        %v208 = vunpack.c.l.b16 %v187
        %v209 = vunpack.c.h.b16 %v187
        %v210 = vunpack.c.l.b16 %v188
        %v211 = vunpack.c.h.b16 %v188
        %v212 = vunpack.c.l.b16 %v189
        %v213 = vunpack.c.h.b16 %v189
        %v214 = vpack.c.b16 %v206, %v198
        %v215 = vpack.c.b16 %v207, %v199
        %v216 = vpack.c.b16 %v208, %v200
        %v217 = vpack.c.b16 %v209, %v201
        %v218 = vpack.c.b16 %v210, %v202
        %v219 = vpack.c.b16 %v211, %v203
        %v220 = vpack.c.b16 %v212, %v204
        %v221 = vpack.c.b16 %v213, %v205
        %vm230 = vcmask 130048
        %v232 = vsel %vm230, %v181, 0
        %234 = vmatprep.subr.bf16.mxu0 0
        %235 = vmatpush1.bf16.msra.mxu0 0
        %236 = vmatprep.subr.bf16.mxu0 0
        %237 = vmatpush1.bf16.msra.mxu0 0
        %238 = vmatprep.subr.bf16.mxu0 0
        %239 = vmatpush1.bf16.msra.mxu0 0
        %240 = vmatprep.subr.bf16.mxu0 0
        %241 = vmatpush1.bf16.msra.mxu0 0
        %242 = vmatprep.subr.bf16.mxu0 0
        %243 = vmatpush1.bf16.msra.mxu0 0
        %244 = vmatprep.subr.bf16.mxu0 0
        %245 = vmatpush1.bf16.msra.mxu0 0
        %246 = vmatprep.subr.bf16.mxu0 0
        %247 = vmatpush1.bf16.msra.mxu0 0
        %248 = vmatprep.subr.bf16.mxu0 %v215
        %249 = vmatpush1.bf16.msra.mxu0 %v214
        %250 = vmatprep.subr.bf16.mxu0 0
        %251 = vmatpush2.bf16.msra.mxu0 0
        %252 = vmatprep.subr.bf16.mxu0 0
        %253 = vmatpush2.bf16.msra.mxu0 0
        %254 = vmatprep.subr.bf16.mxu0 0
        %255 = vmatpush2.bf16.msra.mxu0 0
        %256 = vmatprep.subr.bf16.mxu0 0
        %257 = vmatpush2.bf16.msra.mxu0 0
        %258 = vmatprep.subr.bf16.mxu0 0
        %259 = vmatpush2.bf16.msra.mxu0 0
        %260 = vmatprep.subr.bf16.mxu0 0
        %261 = vmatpush2.bf16.msra.mxu0 0
        %262 = vmatprep.subr.bf16.mxu0 0
        %263 = vmatpush2.bf16.msra.mxu0 0
        %264 = vmatprep.subr.bf16.mxu0 0
        %265 = vmatpush2.bf16.msra.mxu0 0
        %266 = vmatprep.mubr.bf16.mxu0 0
        %267 = vmatmul.mubr.bf16.gmra.mxu0 %v232
        %v268 = vpop.f32.mrf.mxu0
        %v269 = vadd.f32 0.0, %v268
        %v270 = vpop.f32.mrf.mxu0
        %v271 = vadd.f32 0.0, %v270
        %v272 = vpop.f32.mrf.mxu0
        %v273 = vpop.f32.mrf.mxu0
        %274 = vdwg.mxu0
        %275 = vmatprep.subr.bf16.mxu0 0
        %276 = vmatpush1.bf16.msra.mxu0 0
        %277 = vmatprep.subr.bf16.mxu0 0
        %278 = vmatpush1.bf16.msra.mxu0 0
        %279 = vmatprep.subr.bf16.mxu0 0
        %280 = vmatpush1.bf16.msra.mxu0 0
        %281 = vmatprep.subr.bf16.mxu0 0
        %282 = vmatpush1.bf16.msra.mxu0 0
        %283 = vmatprep.subr.bf16.mxu0 0
        %284 = vmatpush1.bf16.msra.mxu0 0
        %285 = vmatprep.subr.bf16.mxu0 0
        %286 = vmatpush1.bf16.msra.mxu0 0
        %287 = vmatprep.subr.bf16.mxu0 0
        %288 = vmatpush1.bf16.msra.mxu0 0
        %289 = vmatprep.subr.bf16.mxu0 %v217
        %290 = vmatpush1.bf16.msra.mxu0 %v216
        %291 = vmatprep.subr.bf16.mxu0 0
        %292 = vmatpush2.bf16.msra.mxu0 0
        %293 = vmatprep.subr.bf16.mxu0 0
        %294 = vmatpush2.bf16.msra.mxu0 0
        %295 = vmatprep.subr.bf16.mxu0 0
        %296 = vmatpush2.bf16.msra.mxu0 0
        %297 = vmatprep.subr.bf16.mxu0 0
        %298 = vmatpush2.bf16.msra.mxu0 0
        %299 = vmatprep.subr.bf16.mxu0 0
        %300 = vmatpush2.bf16.msra.mxu0 0
        %301 = vmatprep.subr.bf16.mxu0 0
        %302 = vmatpush2.bf16.msra.mxu0 0
        %303 = vmatprep.subr.bf16.mxu0 0
        %304 = vmatpush2.bf16.msra.mxu0 0
        %305 = vmatprep.subr.bf16.mxu0 0
        %306 = vmatpush2.bf16.msra.mxu0 0
        %307 = vmatprep.mubr.bf16.mxu0 0
        %308 = vmatmul.mubr.bf16.gmra.mxu0 %v232
        %v309 = vpop.f32.mrf.mxu0
        %v310 = vadd.f32 0.0, %v309
        %v311 = vpop.f32.mrf.mxu0
        %v312 = vadd.f32 0.0, %v311
        %v313 = vpop.f32.mrf.mxu0
        %v314 = vpop.f32.mrf.mxu0
        %315 = vdwg.mxu0
        %316 = vmatprep.subr.bf16.mxu0 0
        %317 = vmatpush1.bf16.msra.mxu0 0
        %318 = vmatprep.subr.bf16.mxu0 0
        %319 = vmatpush1.bf16.msra.mxu0 0
        %320 = vmatprep.subr.bf16.mxu0 0
        %321 = vmatpush1.bf16.msra.mxu0 0
        %322 = vmatprep.subr.bf16.mxu0 0
        %323 = vmatpush1.bf16.msra.mxu0 0
        %324 = vmatprep.subr.bf16.mxu0 0
        %325 = vmatpush1.bf16.msra.mxu0 0
        %326 = vmatprep.subr.bf16.mxu0 0
        %327 = vmatpush1.bf16.msra.mxu0 0
        %328 = vmatprep.subr.bf16.mxu0 0
        %329 = vmatpush1.bf16.msra.mxu0 0
        %330 = vmatprep.subr.bf16.mxu0 %v219
        %331 = vmatpush1.bf16.msra.mxu0 %v218
        %332 = vmatprep.subr.bf16.mxu0 0
        %333 = vmatpush2.bf16.msra.mxu0 0
        %334 = vmatprep.subr.bf16.mxu0 0
        %335 = vmatpush2.bf16.msra.mxu0 0
        %336 = vmatprep.subr.bf16.mxu0 0
        %337 = vmatpush2.bf16.msra.mxu0 0
        %338 = vmatprep.subr.bf16.mxu0 0
        %339 = vmatpush2.bf16.msra.mxu0 0
        %340 = vmatprep.subr.bf16.mxu0 0
        %341 = vmatpush2.bf16.msra.mxu0 0
        %342 = vmatprep.subr.bf16.mxu0 0
        %343 = vmatpush2.bf16.msra.mxu0 0
        %344 = vmatprep.subr.bf16.mxu0 0
        %345 = vmatpush2.bf16.msra.mxu0 0
        %346 = vmatprep.subr.bf16.mxu0 0
        %347 = vmatpush2.bf16.msra.mxu0 0
        %348 = vmatprep.mubr.bf16.mxu0 0
        %349 = vmatmul.mubr.bf16.gmra.mxu0 %v232
        %v350 = vpop.f32.mrf.mxu0
        %v351 = vadd.f32 0.0, %v350
        %v352 = vpop.f32.mrf.mxu0
        %v353 = vadd.f32 0.0, %v352
        %v354 = vpop.f32.mrf.mxu0
        %v355 = vpop.f32.mrf.mxu0
        %356 = vdwg.mxu0
        %357 = vmatprep.subr.bf16.mxu0 0
        %358 = vmatpush1.bf16.msra.mxu0 0
        %359 = vmatprep.subr.bf16.mxu0 0
        %360 = vmatpush1.bf16.msra.mxu0 0
        %361 = vmatprep.subr.bf16.mxu0 0
        %362 = vmatpush1.bf16.msra.mxu0 0
        %363 = vmatprep.subr.bf16.mxu0 0
        %364 = vmatpush1.bf16.msra.mxu0 0
        %365 = vmatprep.subr.bf16.mxu0 0
        %366 = vmatpush1.bf16.msra.mxu0 0
        %367 = vmatprep.subr.bf16.mxu0 0
        %368 = vmatpush1.bf16.msra.mxu0 0
        %369 = vmatprep.subr.bf16.mxu0 0
        %370 = vmatpush1.bf16.msra.mxu0 0
        %371 = vmatprep.subr.bf16.mxu0 %v221
        %372 = vmatpush1.bf16.msra.mxu0 %v220
        %373 = vmatprep.subr.bf16.mxu0 0
        %374 = vmatpush2.bf16.msra.mxu0 0
        %375 = vmatprep.subr.bf16.mxu0 0
        %376 = vmatpush2.bf16.msra.mxu0 0
        %377 = vmatprep.subr.bf16.mxu0 0
        %378 = vmatpush2.bf16.msra.mxu0 0
        %379 = vmatprep.subr.bf16.mxu0 0
        %380 = vmatpush2.bf16.msra.mxu0 0
        %381 = vmatprep.subr.bf16.mxu0 0
        %382 = vmatpush2.bf16.msra.mxu0 0
        %383 = vmatprep.subr.bf16.mxu0 0
        %384 = vmatpush2.bf16.msra.mxu0 0
        %385 = vmatprep.subr.bf16.mxu0 0
        %386 = vmatpush2.bf16.msra.mxu0 0
        %387 = vmatprep.subr.bf16.mxu0 0
        %388 = vmatpush2.bf16.msra.mxu0 0
        %389 = vmatprep.mubr.bf16.mxu0 0
        %390 = vmatmul.mubr.bf16.gmra.mxu0 %v232
        %v391 = vpop.f32.mrf.mxu0
        %v392 = vadd.f32 0.0, %v391
        %v393 = vpop.f32.mrf.mxu0
        %v394 = vadd.f32 0.0, %v393
        %v395 = vpop.f32.mrf.mxu0
        %v396 = vpop.f32.mrf.mxu0
        %397 = vdwg.mxu0
        %v398 = vmul.f32 %v269, 0.2
        %v399 = vmul.f32 %v271, 0.2
        %v400 = vmul.f32 %v310, 0.2
        %v401 = vmul.f32 %v312, 0.2
        %v402 = vmul.f32 %v351, 0.2
        %v403 = vmul.f32 %v353, 0.2
        %v404 = vmul.f32 %v392, 0.2
        %v405 = vmul.f32 %v394, 0.2
        %v406 = vmax.f32 %v269, %v398
        %v407 = vmax.f32 %v271, %v399
        %v408 = vmax.f32 %v310, %v400
        %v409 = vmax.f32 %v312, %v401
        %v410 = vmax.f32 %v351, %v402
        %v411 = vmax.f32 %v353, %v403
        %v412 = vmax.f32 %v392, %v404
        %v413 = vmax.f32 %v394, %v405
        %v414 = vpack.c.bf16 %v406, %v406
        %v415 = vpack.c.bf16 %v407, %v407
        %v416 = vpack.c.bf16 %v408, %v408
        %v417 = vpack.c.bf16 %v409, %v409
        %v418 = vpack.c.bf16 %v410, %v410
        %v419 = vpack.c.bf16 %v411, %v411
        %v420 = vpack.c.bf16 %v412, %v412
        %v421 = vpack.c.bf16 %v413, %v413
        %v430 = vunpack.c.l.b16 %v414
        %v431 = vunpack.c.l.b16 %v415
        %v432 = vunpack.c.l.b16 %v416
        %v433 = vunpack.c.l.b16 %v417
        %v434 = vunpack.c.l.b16 %v418
        %v435 = vunpack.c.l.b16 %v419
        %v436 = vunpack.c.l.b16 %v420
        %v437 = vunpack.c.l.b16 %v421
        %v438 = vpack.c.b16 %v431, %v430
        %v439 = vpack.c.b16 %v433, %v432
        %v440 = vpack.c.b16 %v435, %v434
        %v441 = vpack.c.b16 %v437, %v436
        %446 = vst [vmem:[%s178] sm:$0xff] %v438
        %447 = vst [vmem:[%s178 + $0x8] sm:$0xff] %v439
        %448 = vst [vmem:[%s178 + $0x10] sm:$0xff] %v440
        %449 = vst [vmem:[%s178 + $0x18] sm:$0xff] %v441
        %s450 = smul.u32 8, %s13
        %p451 = scmp.lt.s32.totalorder %s450, 15
        %s452 = scalar_select %p451, %s450, 15
        %s453 = smul.addr %s452, 4
        %s454 = scalar_lea.vmem %s2, %s453
        // Predicated region
        $region52: #{discriminator_forward.4} parent=46 // pred_check
          %p455 = pneg %p78
        $region53: #{discriminator_forward.4} parent=46 // pred_check_branch
          %457 = sbr.rel (%p455) target = $region55
        $region54: #{discriminator_forward.4} parent=46 // pred_region
          %s458 = smul.u32 8, %s13
        $region55: #{discriminator_forward.4} parent=46 // pred_fallthru
          _
      $region47: #{discriminator_forward.4} parent=5 // pred_fallthru
        _
      %p459 = scmp.le.s32.totalorder 2, %s8
      // Predicated region
      $region56: #{discriminator_forward.4} parent=5 // pred_check
        %p460 = pneg %p459
      $region57: #{discriminator_forward.4} parent=5 // pred_check_branch
        %462 = sbr.rel (%p460) target = $region59
      $region58: #{discriminator_forward.4} parent=5 // pred_region
        %s463 = ssub.s32 %s8, 2
        // Predicated region
        $region60: #{discriminator_forward.4} parent=58 // pred_check
          %p464 = pneg %p84
        $region61: #{discriminator_forward.4} parent=58 // pred_check_branch
          %466 = sbr.rel (%p464) target = $region63
        $region62: #{discriminator_forward.4} parent=58 // pred_region
          %s467 = smul.u32 8, %s14
          %p468 = scmp.lt.s32.totalorder %s467, 15
          %s469 = scalar_select %p468, %s467, 15
          %s470 = smul.addr %s469, 4
          %s471 = scalar_lea.vmem %s2, %s470
        $region63: #{discriminator_forward.4} parent=58 // pred_fallthru
          _
      $region59: #{discriminator_forward.4} parent=5 // pred_fallthru
        _
    $region6: #{discriminator_forward.4} parent=1 // loop_footer
      %s12 = sadd.s32 1, %s8
    $region7: #{discriminator_forward.4} parent=1 // loop_footer_branch
      %7 = sbr.rel target = $region3
    $region8: #{discriminator_forward.4} parent=1 // loop_exit
      _

// kernel: discriminator_forward.5
$region0: #{discriminator_forward.5}
  #allocation0 [shape = 'u32[]', space=smem, size = 0x4, offset = 0x4, fixed_abs, tag = 'smem constant byte address 0x4 - core index']
  #allocation1 [shape = 'u32[144,128]{1,0:T(1,128)}', space=vmem, size = 0x12000, scoped, tag = 'internal scratch']
  %s0 = inlined_call_operand.vmem [shape: bf16[16,128], index: 0, kind: input, shape index: {}]
  %s1 = inlined_call_operand.vmem [shape: bf16[128,512], index: 1, kind: input, shape index: {}]
  %s2 = inlined_call_operand.vmem [shape: f32[16,1], index: 2, kind: input, shape index: {}]
  %s3 = inlined_call_operand.vmem [shape: f32[16,1], index: 3, kind: input, shape index: {}]
  %s4 = inlined_call_operand.vmem [shape: f32[16,1], index: 4, kind: input, shape index: {}]
  %s5 = inlined_call_operand.vmem [shape: bf16[16,512], index: 5, kind: output, shape index: {}]
  %s6 = sld [smem:[#allocation0]]
  $region30: #{discriminator_forward.5} parent=0
    _
  %s8 = ssub.s32 1, %s6
  %s9 = scalar_select 0, %s8, %s6
  // Predicated region
  $region2: #{discriminator_forward.5} parent=0 // pred_check
    _
  $region3: #{discriminator_forward.5} parent=0 // pred_check_branch
    %11 = sbr.rel (0) target = $region5
  $region4: #{discriminator_forward.5} parent=0 // pred_region
    _
  $region5: #{discriminator_forward.5} parent=0 // pred_fallthru
    _
  // Predicated region
  $region6: #{discriminator_forward.5} parent=0 // pred_check
    _
  $region7: #{discriminator_forward.5} parent=0 // pred_check_branch
    %13 = sbr.rel (0) target = $region9
  $region8: #{discriminator_forward.5} parent=0 // pred_region
    _
  $region9: #{discriminator_forward.5} parent=0 // pred_fallthru
    _
  // Predicated region
  $region10: #{discriminator_forward.5} parent=0 // pred_check
    _
  $region11: #{discriminator_forward.5} parent=0 // pred_check_branch
    %15 = sbr.rel (0) target = $region13
  $region12: #{discriminator_forward.5} parent=0 // pred_region
    _
  $region13: #{discriminator_forward.5} parent=0 // pred_fallthru
    _
  // Predicated region
  $region14: #{discriminator_forward.5} parent=0 // pred_check
    _
  $region15: #{discriminator_forward.5} parent=0 // pred_check_branch
    %17 = sbr.rel (0) target = $region17
  $region16: #{discriminator_forward.5} parent=0 // pred_region
    _
  $region17: #{discriminator_forward.5} parent=0 // pred_fallthru
    _
  // Predicated region
  $region18: #{discriminator_forward.5} parent=0 // pred_check
    _
  $region19: #{discriminator_forward.5} parent=0 // pred_check_branch
    %19 = sbr.rel (0) target = $region21
  $region20: #{discriminator_forward.5} parent=0 // pred_region
    _
  $region21: #{discriminator_forward.5} parent=0 // pred_fallthru
    _
  %v21 = vld [vmem:[%s0] sm:$0xf]
  %v22 = vld [vmem:[%s0 + $0x4] sm:$0xf]
  %v23 = vld [vmem:[%s1] sm:$0xff]
  %v24 = vld [vmem:[%s1 + $0x8] sm:$0xff]
  %v25 = vld [vmem:[%s1 + $0x10] sm:$0xff]
  %v26 = vld [vmem:[%s1 + $0x18] sm:$0xff]
  %v27 = vld [vmem:[%s1 + $0x20] sm:$0xff]
  %v28 = vld [vmem:[%s1 + $0x28] sm:$0xff]
  %v29 = vld [vmem:[%s1 + $0x30] sm:$0xff]
  %v30 = vld [vmem:[%s1 + $0x38] sm:$0xff]
  %v31 = vld [vmem:[%s1 + $0x40] sm:$0xff]
  %v32 = vld [vmem:[%s1 + $0x48] sm:$0xff]
  %v33 = vld [vmem:[%s1 + $0x50] sm:$0xff]
  %v34 = vld [vmem:[%s1 + $0x58] sm:$0xff]
  %v35 = vld [vmem:[%s1 + $0x60] sm:$0xff]
  %v36 = vld [vmem:[%s1 + $0x68] sm:$0xff]
  %v37 = vld [vmem:[%s1 + $0x70] sm:$0xff]
  %v38 = vld [vmem:[%s1 + $0x78] sm:$0xff]
  %v39 = vld [vmem:[%s1 + $0x80] sm:$0xff]
  %v40 = vld [vmem:[%s1 + $0x88] sm:$0xff]
  %v41 = vld [vmem:[%s1 + $0x90] sm:$0xff]
  %v42 = vld [vmem:[%s1 + $0x98] sm:$0xff]
  %v43 = vld [vmem:[%s1 + $0xa0] sm:$0xff]
  %v44 = vld [vmem:[%s1 + $0xa8] sm:$0xff]
  %v45 = vld [vmem:[%s1 + $0xb0] sm:$0xff]
  %v46 = vld [vmem:[%s1 + $0xb8] sm:$0xff]
  %v47 = vld [vmem:[%s1 + $0xc0] sm:$0xff]
  %v48 = vld [vmem:[%s1 + $0xc8] sm:$0xff]
  %v49 = vld [vmem:[%s1 + $0xd0] sm:$0xff]
  %v50 = vld [vmem:[%s1 + $0xd8] sm:$0xff]
  %v51 = vld [vmem:[%s1 + $0xe0] sm:$0xff]
  %v52 = vld [vmem:[%s1 + $0xe8] sm:$0xff]
  %v53 = vld [vmem:[%s1 + $0xf0] sm:$0xff]
  %v54 = vld [vmem:[%s1 + $0xf8] sm:$0xff]
  %v55 = vld [vmem:[%s2] sm:$0xff]
  %v56 = vld [vmem:[%s2 + $0x8] sm:$0xff]
  %58 = vset.pattern.permute.xlu0 0
  %59 = vperm.xlu0 %58, %v55
  %v60 = vpop.permute.xlu0 %59
  %63 = vset.pattern.permute.xlu0 0
  %64 = vperm.xlu0 %63, %v56
  %v65 = vpop.permute.xlu0 %64
  %v69 = vunpack.c.l.b16 %v21
  %v70 = vunpack.c.l.b16 %v22
  %v71 = vpack.c.b16 %v70, %v69
  %v105 = vunpack.c.l.b16 %v23
  %v106 = vunpack.c.h.b16 %v23
  %v107 = vunpack.c.l.b16 %v24
  %v108 = vunpack.c.h.b16 %v24
  %v109 = vunpack.c.l.b16 %v25
  %v110 = vunpack.c.h.b16 %v25
  %v111 = vunpack.c.l.b16 %v26
  %v112 = vunpack.c.h.b16 %v26
  %v113 = vunpack.c.l.b16 %v27
  %v114 = vunpack.c.h.b16 %v27
  %v115 = vunpack.c.l.b16 %v28
  %v116 = vunpack.c.h.b16 %v28
  %v117 = vunpack.c.l.b16 %v29
  %v118 = vunpack.c.h.b16 %v29
  %v119 = vunpack.c.l.b16 %v30
  %v120 = vunpack.c.h.b16 %v30
  %v121 = vunpack.c.l.b16 %v31
  %v122 = vunpack.c.h.b16 %v31
  %v123 = vunpack.c.l.b16 %v32
  %v124 = vunpack.c.h.b16 %v32
  %v125 = vunpack.c.l.b16 %v33
  %v126 = vunpack.c.h.b16 %v33
  %v127 = vunpack.c.l.b16 %v34
  %v128 = vunpack.c.h.b16 %v34
  %v129 = vunpack.c.l.b16 %v35
  %v130 = vunpack.c.h.b16 %v35
  %v131 = vunpack.c.l.b16 %v36
  %v132 = vunpack.c.h.b16 %v36
  %v133 = vunpack.c.l.b16 %v37
  %v134 = vunpack.c.h.b16 %v37
  %v135 = vunpack.c.l.b16 %v38
  %v136 = vunpack.c.h.b16 %v38
  %v137 = vunpack.c.l.b16 %v39
  %v138 = vunpack.c.h.b16 %v39
  %v139 = vunpack.c.l.b16 %v40
  %v140 = vunpack.c.h.b16 %v40
  %v141 = vunpack.c.l.b16 %v41
  %v142 = vunpack.c.h.b16 %v41
  %v143 = vunpack.c.l.b16 %v42
  %v144 = vunpack.c.h.b16 %v42
  %v145 = vunpack.c.l.b16 %v43
  %v146 = vunpack.c.h.b16 %v43
  %v147 = vunpack.c.l.b16 %v44
  %v148 = vunpack.c.h.b16 %v44
  %v149 = vunpack.c.l.b16 %v45
  %v150 = vunpack.c.h.b16 %v45
  %v151 = vunpack.c.l.b16 %v46
  %v152 = vunpack.c.h.b16 %v46
  %v153 = vunpack.c.l.b16 %v47
  %v154 = vunpack.c.h.b16 %v47
  %v155 = vunpack.c.l.b16 %v48
  %v156 = vunpack.c.h.b16 %v48
  %v157 = vunpack.c.l.b16 %v49
  %v158 = vunpack.c.h.b16 %v49
  %v159 = vunpack.c.l.b16 %v50
  %v160 = vunpack.c.h.b16 %v50
  %v161 = vunpack.c.l.b16 %v51
  %v162 = vunpack.c.h.b16 %v51
  %v163 = vunpack.c.l.b16 %v52
  %v164 = vunpack.c.h.b16 %v52
  %v165 = vunpack.c.l.b16 %v53
  %v166 = vunpack.c.h.b16 %v53
  %v167 = vunpack.c.l.b16 %v54
  %v168 = vunpack.c.h.b16 %v54
  %v169 = vpack.c.b16 %v109, %v105
  %v170 = vpack.c.b16 %v110, %v106
  %v171 = vpack.c.b16 %v111, %v107
  %v172 = vpack.c.b16 %v112, %v108
  %v173 = vpack.c.b16 %v117, %v113
  %v174 = vpack.c.b16 %v118, %v114
  %v175 = vpack.c.b16 %v119, %v115
  %v176 = vpack.c.b16 %v120, %v116
  %v177 = vpack.c.b16 %v125, %v121
  %v178 = vpack.c.b16 %v126, %v122
  %v179 = vpack.c.b16 %v127, %v123
  %v180 = vpack.c.b16 %v128, %v124
  %v181 = vpack.c.b16 %v133, %v129
  %v182 = vpack.c.b16 %v134, %v130
  %v183 = vpack.c.b16 %v135, %v131
  %v184 = vpack.c.b16 %v136, %v132
  %v185 = vpack.c.b16 %v141, %v137
  %v186 = vpack.c.b16 %v142, %v138
  %v187 = vpack.c.b16 %v143, %v139
  %v188 = vpack.c.b16 %v144, %v140
  %v189 = vpack.c.b16 %v149, %v145
  %v190 = vpack.c.b16 %v150, %v146
  %v191 = vpack.c.b16 %v151, %v147
  %v192 = vpack.c.b16 %v152, %v148
  %v193 = vpack.c.b16 %v157, %v153
  %v194 = vpack.c.b16 %v158, %v154
  %v195 = vpack.c.b16 %v159, %v155
  %v196 = vpack.c.b16 %v160, %v156
  %v197 = vpack.c.b16 %v165, %v161
  %v198 = vpack.c.b16 %v166, %v162
  %v199 = vpack.c.b16 %v167, %v163
  %v200 = vpack.c.b16 %v168, %v164
  %233 = vmatprep.subr.bf16.mxu0 %v198
  %234 = vmatpush1.bf16.msra.mxu0 %v197
  %235 = vmatprep.subr.bf16.mxu0 %v194
  %236 = vmatpush1.bf16.msra.mxu0 %v193
  %237 = vmatprep.subr.bf16.mxu0 %v190
  %238 = vmatpush1.bf16.msra.mxu0 %v189
  %239 = vmatprep.subr.bf16.mxu0 %v186
  %240 = vmatpush1.bf16.msra.mxu0 %v185
  %241 = vmatprep.subr.bf16.mxu0 %v182
  %242 = vmatpush1.bf16.msra.mxu0 %v181
  %243 = vmatprep.subr.bf16.mxu0 %v178
  %244 = vmatpush1.bf16.msra.mxu0 %v177
  %245 = vmatprep.subr.bf16.mxu0 %v174
  %246 = vmatpush1.bf16.msra.mxu0 %v173
  %247 = vmatprep.subr.bf16.mxu0 %v170
  %248 = vmatpush1.bf16.msra.mxu0 %v169
  %249 = vmatprep.subr.bf16.mxu0 0
  %250 = vmatpush2.bf16.msra.mxu0 0
  %251 = vmatprep.subr.bf16.mxu0 0
  %252 = vmatpush2.bf16.msra.mxu0 0
  %253 = vmatprep.subr.bf16.mxu0 0
  %254 = vmatpush2.bf16.msra.mxu0 0
  %255 = vmatprep.subr.bf16.mxu0 0
  %256 = vmatpush2.bf16.msra.mxu0 0
  %257 = vmatprep.subr.bf16.mxu0 0
  %258 = vmatpush2.bf16.msra.mxu0 0
  %259 = vmatprep.subr.bf16.mxu0 0
  %260 = vmatpush2.bf16.msra.mxu0 0
  %261 = vmatprep.subr.bf16.mxu0 0
  %262 = vmatpush2.bf16.msra.mxu0 0
  %263 = vmatprep.subr.bf16.mxu0 0
  %264 = vmatpush2.bf16.msra.mxu0 0
  %265 = vmatprep.mubr.bf16.mxu0 0
  %266 = vmatmul.mubr.bf16.gmra.mxu0 %v71
  %v267 = vpop.f32.mrf.mxu0
  %v268 = vadd.f32 %v60, %v267
  %v269 = vpop.f32.mrf.mxu0
  %v270 = vadd.f32 %v60, %v269
  %v271 = vpop.f32.mrf.mxu0
  %v272 = vadd.f32 %v65, %v271
  %v273 = vpop.f32.mrf.mxu0
  %v274 = vadd.f32 %v65, %v273
  %275 = vdwg.mxu0
  %276 = vmatprep.subr.bf16.mxu0 %v200
  %277 = vmatpush1.bf16.msra.mxu0 %v199
  %278 = vmatprep.subr.bf16.mxu0 %v196
  %279 = vmatpush1.bf16.msra.mxu0 %v195
  %280 = vmatprep.subr.bf16.mxu0 %v192
  %281 = vmatpush1.bf16.msra.mxu0 %v191
  %282 = vmatprep.subr.bf16.mxu0 %v188
  %283 = vmatpush1.bf16.msra.mxu0 %v187
  %284 = vmatprep.subr.bf16.mxu0 %v184
  %285 = vmatpush1.bf16.msra.mxu0 %v183
  %286 = vmatprep.subr.bf16.mxu0 %v180
  %287 = vmatpush1.bf16.msra.mxu0 %v179
  %288 = vmatprep.subr.bf16.mxu0 %v176
  %289 = vmatpush1.bf16.msra.mxu0 %v175
  %290 = vmatprep.subr.bf16.mxu0 %v172
  %291 = vmatpush1.bf16.msra.mxu0 %v171
  %292 = vmatprep.subr.bf16.mxu0 0
  %293 = vmatpush2.bf16.msra.mxu0 0
  %294 = vmatprep.subr.bf16.mxu0 0
  %295 = vmatpush2.bf16.msra.mxu0 0
  %296 = vmatprep.subr.bf16.mxu0 0
  %297 = vmatpush2.bf16.msra.mxu0 0
  %298 = vmatprep.subr.bf16.mxu0 0
  %299 = vmatpush2.bf16.msra.mxu0 0
  %300 = vmatprep.subr.bf16.mxu0 0
  %301 = vmatpush2.bf16.msra.mxu0 0
  %302 = vmatprep.subr.bf16.mxu0 0
  %303 = vmatpush2.bf16.msra.mxu0 0
  %304 = vmatprep.subr.bf16.mxu0 0
  %305 = vmatpush2.bf16.msra.mxu0 0
  %306 = vmatprep.subr.bf16.mxu0 0
  %307 = vmatpush2.bf16.msra.mxu0 0
  %308 = vmatprep.mubr.bf16.mxu0 0
  %309 = vmatmul.mubr.bf16.gmra.mxu0 %v71
  %v310 = vpop.f32.mrf.mxu0
  %v311 = vadd.f32 %v60, %v310
  %v312 = vpop.f32.mrf.mxu0
  %v313 = vadd.f32 %v60, %v312
  %v314 = vpop.f32.mrf.mxu0
  %v315 = vadd.f32 %v65, %v314
  %v316 = vpop.f32.mrf.mxu0
  %v317 = vadd.f32 %v65, %v316
  %318 = vdwg.mxu0
  %v319 = vadd.f32 %v268, %v270
  %v320 = vadd.f32 %v319, %v311
  %v321 = vadd.f32 %v320, %v313
  %322 = vadd.xlane.f32.xlu0 %v321
  %v323 = vpop.xlane.xlu0 %322
  %v324 = vadd.f32 %v272, %v274
  %v325 = vadd.f32 %v324, %v315
  %v326 = vadd.f32 %v325, %v317
  %327 = vadd.xlane.f32.xlu0 %v326
  %v328 = vpop.xlane.xlu0 %327
  %v329 = vrcp.pop 512.0
  %v330 = vmul.f32 %v323, %v329
  %v331 = vmul.f32 %v328, %v329
  %v332 = vsub.f32 %v268, %v330
  %v333 = vsub.f32 %v270, %v330
  %v334 = vsub.f32 %v311, %v330
  %v335 = vsub.f32 %v313, %v330
  %v336 = vsub.f32 %v272, %v331
  %v337 = vsub.f32 %v274, %v331
  %v338 = vsub.f32 %v315, %v331
  %v339 = vsub.f32 %v317, %v331
  %v340 = vmul.f32 %v332, %v332
  %v341 = vmul.f32 %v333, %v333
  %v342 = vmul.f32 %v334, %v334
  %v343 = vmul.f32 %v335, %v335
  %v344 = vmul.f32 %v336, %v336
  %v345 = vmul.f32 %v337, %v337
  %v346 = vmul.f32 %v338, %v338
  %v347 = vmul.f32 %v339, %v339
  %v348 = vadd.f32 %v340, %v341
  %v349 = vadd.f32 %v348, %v342
  %v350 = vadd.f32 %v349, %v343
  %351 = vadd.xlane.f32.xlu0 %v350
  %v352 = vpop.xlane.xlu0 %351
  %v353 = vadd.f32 %v344, %v345
  %v354 = vadd.f32 %v353, %v346
  %v355 = vadd.f32 %v354, %v347
  %356 = vadd.xlane.f32.xlu0 %v355
  %v357 = vpop.xlane.xlu0 %356
  %v358 = vmul.f32 %v352, %v329
  %v359 = vmul.f32 %v357, %v329
  %v360 = vmax.f32 %v358, 0.0
  %v361 = vmax.f32 %v359, 0.0
  %v362 = vadd.f32 %v360, 1e-05
  %v363 = vadd.f32 %v361, 1e-05
  %v364 = vrsqrt.pop %v362
  %v365 = vrsqrt.pop %v363
  %v366 = vld [vmem:[%s3] sm:$0xff]
  %v367 = vld [vmem:[%s3 + $0x8] sm:$0xff]
  %v368 = vmul.f32 %v364, %v366
  %v369 = vmul.f32 %v365, %v367
  %v370 = vld [vmem:[%s4] sm:$0xff]
  %v371 = vld [vmem:[%s4 + $0x8] sm:$0xff]
  %v372 = vmul.f32 %v330, %v368
  %v373 = vmul.f32 %v331, %v369
  %v374 = vsub.f32 %v370, %v372
  %v375 = vsub.f32 %v371, %v373
  %377 = vset.pattern.permute.xlu0 0
  %378 = vperm.xlu0 %377, %v368
  %v379 = vpop.permute.xlu0 %378
  %382 = vset.pattern.permute.xlu0 0
  %383 = vperm.xlu0 %382, %v369
  %v384 = vpop.permute.xlu0 %383
  %v386 = vmul.f32 %v268, %v379
  %v387 = vmul.f32 %v270, %v379
  %v388 = vmul.f32 %v311, %v379
  %v389 = vmul.f32 %v313, %v379
  %v390 = vmul.f32 %v272, %v384
  %v391 = vmul.f32 %v274, %v384
  %v392 = vmul.f32 %v315, %v384
  %v393 = vmul.f32 %v317, %v384
  %395 = vset.pattern.permute.xlu0 0
  %396 = vperm.xlu0 %395, %v374
  %v397 = vpop.permute.xlu0 %396
  %400 = vset.pattern.permute.xlu0 0
  %401 = vperm.xlu0 %400, %v375
  %v402 = vpop.permute.xlu0 %401
  %v404 = vadd.f32 %v386, %v397
  %v405 = vadd.f32 %v387, %v397
  %v406 = vadd.f32 %v388, %v397
  %v407 = vadd.f32 %v389, %v397
  %v408 = vadd.f32 %v390, %v402
  %v409 = vadd.f32 %v391, %v402
  %v410 = vadd.f32 %v392, %v402
  %v411 = vadd.f32 %v393, %v402
  %v412 = vmul.f32 %v404, 0.2
  %v413 = vmul.f32 %v405, 0.2
  %v414 = vmul.f32 %v406, 0.2
  %v415 = vmul.f32 %v407, 0.2
  %v416 = vmul.f32 %v408, 0.2
  %v417 = vmul.f32 %v409, 0.2
  %v418 = vmul.f32 %v410, 0.2
  %v419 = vmul.f32 %v411, 0.2
  %v420 = vmax.f32 %v404, %v412
  %v421 = vmax.f32 %v405, %v413
  %v422 = vmax.f32 %v406, %v414
  %v423 = vmax.f32 %v407, %v415
  %v424 = vmax.f32 %v408, %v416
  %v425 = vmax.f32 %v409, %v417
  %v426 = vmax.f32 %v410, %v418
  %v427 = vmax.f32 %v411, %v419
  %v428 = vpack.c.bf16 %v424, %v420
  %v429 = vpack.c.bf16 %v425, %v421
  %v430 = vpack.c.bf16 %v426, %v422
  %v431 = vpack.c.bf16 %v427, %v423
  %v436 = vunpack.c.l.b16 %v428
  %v437 = vunpack.c.l.b16 %v429
  %v438 = vunpack.c.l.b16 %v430
  %v439 = vunpack.c.l.b16 %v431
  %v440 = vunpack.c.h.b16 %v428
  %v441 = vunpack.c.h.b16 %v429
  %v442 = vunpack.c.h.b16 %v430
  %v443 = vunpack.c.h.b16 %v431
  %v444 = vpack.c.b16 %v437, %v436
  %v445 = vpack.c.b16 %v439, %v438
  %v446 = vpack.c.b16 %v441, %v440
  %v447 = vpack.c.b16 %v443, %v442
  %452 = vst [vmem:[%s5] sm:$0xff] %v444
  %453 = vst [vmem:[%s5 + $0x8] sm:$0xff] %v445
  %454 = vst [vmem:[%s5 + $0x10] sm:$0xff] %v446
  %455 = vst [vmem:[%s5 + $0x18] sm:$0xff] %v447
  // Predicated region
  $region22: #{discriminator_forward.5} parent=0 // pred_check
    _
  $region23: #{discriminator_forward.5} parent=0 // pred_check_branch
    %457 = sbr.rel (0) target = $region25
  $region24: #{discriminator_forward.5} parent=0 // pred_region
    _
  $region25: #{discriminator_forward.5} parent=0 // pred_fallthru
    _
  // Predicated region
  $region26: #{discriminator_forward.5} parent=0 // pred_check
    _
  $region27: #{discriminator_forward.5} parent=0 // pred_check_branch
    %459 = sbr.rel (0) target = $region29
  $region28: #{discriminator_forward.5} parent=0 // pred_region
    _
  $region29: #{discriminator_forward.5} parent=0 // pred_fallthru
    _

// kernel: discriminator_forward.6
$region0: #{discriminator_forward.6}
  #allocation0 [shape = 'u32[]', space=smem, size = 0x4, offset = 0x4, fixed_abs, tag = 'smem constant byte address 0x4 - core index']
  #allocation1 [shape = 'u32[144,128]{1,0:T(1,128)}', space=vmem, size = 0x12000, scoped, tag = 'internal scratch']
  %s0 = inlined_call_operand.vmem [shape: bf16[32,256], index: 0, kind: input, shape index: {}]
  %s1 = inlined_call_operand.vmem [shape: bf16[256,128], index: 1, kind: input, shape index: {}]
  %s2 = inlined_call_operand.vmem [shape: f32[32,1], index: 2, kind: input, shape index: {}]
  %s3 = inlined_call_operand.vmem [shape: f32[32,1], index: 3, kind: input, shape index: {}]
  %s4 = inlined_call_operand.vmem [shape: f32[32,1], index: 4, kind: input, shape index: {}]
  %s5 = inlined_call_operand.vmem [shape: bf16[32,128], index: 5, kind: output, shape index: {}]
  %s6 = sld [smem:[#allocation0]]
  $region30: #{discriminator_forward.6} parent=0
    _
  %s8 = ssub.s32 1, %s6
  %s9 = scalar_select 0, %s8, %s6
  // Predicated region
  $region2: #{discriminator_forward.6} parent=0 // pred_check
    _
  $region3: #{discriminator_forward.6} parent=0 // pred_check_branch
    %11 = sbr.rel (0) target = $region5
  $region4: #{discriminator_forward.6} parent=0 // pred_region
    _
  $region5: #{discriminator_forward.6} parent=0 // pred_fallthru
    _
  // Predicated region
  $region6: #{discriminator_forward.6} parent=0 // pred_check
    _
  $region7: #{discriminator_forward.6} parent=0 // pred_check_branch
    %13 = sbr.rel (0) target = $region9
  $region8: #{discriminator_forward.6} parent=0 // pred_region
    _
  $region9: #{discriminator_forward.6} parent=0 // pred_fallthru
    _
  // Predicated region
  $region10: #{discriminator_forward.6} parent=0 // pred_check
    _
  $region11: #{discriminator_forward.6} parent=0 // pred_check_branch
    %15 = sbr.rel (0) target = $region13
  $region12: #{discriminator_forward.6} parent=0 // pred_region
    _
  $region13: #{discriminator_forward.6} parent=0 // pred_fallthru
    _
  // Predicated region
  $region14: #{discriminator_forward.6} parent=0 // pred_check
    _
  $region15: #{discriminator_forward.6} parent=0 // pred_check_branch
    %17 = sbr.rel (0) target = $region17
  $region16: #{discriminator_forward.6} parent=0 // pred_region
    _
  $region17: #{discriminator_forward.6} parent=0 // pred_fallthru
    _
  // Predicated region
  $region18: #{discriminator_forward.6} parent=0 // pred_check
    _
  $region19: #{discriminator_forward.6} parent=0 // pred_check_branch
    %19 = sbr.rel (0) target = $region21
  $region20: #{discriminator_forward.6} parent=0 // pred_region
    _
  $region21: #{discriminator_forward.6} parent=0 // pred_fallthru
    _
  %v21 = vld [vmem:[%s0] sm:$0xff]
  %v22 = vld [vmem:[%s0 + $0x8] sm:$0xff]
  %v23 = vld [vmem:[%s0 + $0x10] sm:$0xff]
  %v24 = vld [vmem:[%s0 + $0x18] sm:$0xff]
  %v25 = vld [vmem:[%s1] sm:$0xf]
  %v26 = vld [vmem:[%s1 + $0x4] sm:$0xf]
  %v27 = vld [vmem:[%s1 + $0x8] sm:$0xf]
  %v28 = vld [vmem:[%s1 + $0xc] sm:$0xf]
  %v29 = vld [vmem:[%s1 + $0x10] sm:$0xf]
  %v30 = vld [vmem:[%s1 + $0x14] sm:$0xf]
  %v31 = vld [vmem:[%s1 + $0x18] sm:$0xf]
  %v32 = vld [vmem:[%s1 + $0x1c] sm:$0xf]
  %v33 = vld [vmem:[%s1 + $0x20] sm:$0xf]
  %v34 = vld [vmem:[%s1 + $0x24] sm:$0xf]
  %v35 = vld [vmem:[%s1 + $0x28] sm:$0xf]
  %v36 = vld [vmem:[%s1 + $0x2c] sm:$0xf]
  %v37 = vld [vmem:[%s1 + $0x30] sm:$0xf]
  %v38 = vld [vmem:[%s1 + $0x34] sm:$0xf]
  %v39 = vld [vmem:[%s1 + $0x38] sm:$0xf]
  %v40 = vld [vmem:[%s1 + $0x3c] sm:$0xf]
  %v41 = vld [vmem:[%s1 + $0x40] sm:$0xf]
  %v42 = vld [vmem:[%s1 + $0x44] sm:$0xf]
  %v43 = vld [vmem:[%s1 + $0x48] sm:$0xf]
  %v44 = vld [vmem:[%s1 + $0x4c] sm:$0xf]
  %v45 = vld [vmem:[%s1 + $0x50] sm:$0xf]
  %v46 = vld [vmem:[%s1 + $0x54] sm:$0xf]
  %v47 = vld [vmem:[%s1 + $0x58] sm:$0xf]
  %v48 = vld [vmem:[%s1 + $0x5c] sm:$0xf]
  %v49 = vld [vmem:[%s1 + $0x60] sm:$0xf]
  %v50 = vld [vmem:[%s1 + $0x64] sm:$0xf]
  %v51 = vld [vmem:[%s1 + $0x68] sm:$0xf]
  %v52 = vld [vmem:[%s1 + $0x6c] sm:$0xf]
  %v53 = vld [vmem:[%s1 + $0x70] sm:$0xf]
  %v54 = vld [vmem:[%s1 + $0x74] sm:$0xf]
  %v55 = vld [vmem:[%s1 + $0x78] sm:$0xf]
  %v56 = vld [vmem:[%s1 + $0x7c] sm:$0xf]
  %v57 = vld [vmem:[%s2] sm:$0xff]
  %v58 = vld [vmem:[%s2 + $0x8] sm:$0xff]
  %v59 = vld [vmem:[%s2 + $0x10] sm:$0xff]
  %v60 = vld [vmem:[%s2 + $0x18] sm:$0xff]
  %62 = vset.pattern.permute.xlu0 0
  %63 = vperm.xlu0 %62, %v57
  %v64 = vpop.permute.xlu0 %63
  %67 = vset.pattern.permute.xlu0 0
  %68 = vperm.xlu0 %67, %v58
  %v69 = vpop.permute.xlu0 %68
  %72 = vset.pattern.permute.xlu0 0
  %73 = vperm.xlu0 %72, %v59
  %v74 = vpop.permute.xlu0 %73
  %77 = vset.pattern.permute.xlu0 0
  %78 = vperm.xlu0 %77, %v60
  %v79 = vpop.permute.xlu0 %78
  %v85 = vunpack.c.l.b16 %v21
  %v86 = vunpack.c.h.b16 %v21
  %v87 = vunpack.c.l.b16 %v22
  %v88 = vunpack.c.h.b16 %v22
  %v89 = vunpack.c.l.b16 %v23
  %v90 = vunpack.c.h.b16 %v23
  %v91 = vunpack.c.l.b16 %v24
  %v92 = vunpack.c.h.b16 %v24
  %v93 = vpack.c.b16 %v87, %v85
  %v94 = vpack.c.b16 %v88, %v86
  %v95 = vpack.c.b16 %v91, %v89
  %v96 = vpack.c.b16 %v92, %v90
  %v133 = vunpack.c.l.b16 %v25
  %v134 = vunpack.c.l.b16 %v26
  %v135 = vunpack.c.l.b16 %v27
  %v136 = vunpack.c.l.b16 %v28
  %v137 = vunpack.c.l.b16 %v29
  %v138 = vunpack.c.l.b16 %v30
  %v139 = vunpack.c.l.b16 %v31
  %v140 = vunpack.c.l.b16 %v32
  %v141 = vunpack.c.l.b16 %v33
  %v142 = vunpack.c.l.b16 %v34
  %v143 = vunpack.c.l.b16 %v35
  %v144 = vunpack.c.l.b16 %v36
  %v145 = vunpack.c.l.b16 %v37
  %v146 = vunpack.c.l.b16 %v38
  %v147 = vunpack.c.l.b16 %v39
  %v148 = vunpack.c.l.b16 %v40
  %v149 = vunpack.c.l.b16 %v41
  %v150 = vunpack.c.l.b16 %v42
  %v151 = vunpack.c.l.b16 %v43
  %v152 = vunpack.c.l.b16 %v44
  %v153 = vunpack.c.l.b16 %v45
  %v154 = vunpack.c.l.b16 %v46
  %v155 = vunpack.c.l.b16 %v47
  %v156 = vunpack.c.l.b16 %v48
  %v157 = vunpack.c.l.b16 %v49
  %v158 = vunpack.c.l.b16 %v50
  %v159 = vunpack.c.l.b16 %v51
  %v160 = vunpack.c.l.b16 %v52
  %v161 = vunpack.c.l.b16 %v53
  %v162 = vunpack.c.l.b16 %v54
  %v163 = vunpack.c.l.b16 %v55
  %v164 = vunpack.c.l.b16 %v56
  %v165 = vpack.c.b16 %v134, %v133
  %v166 = vpack.c.b16 %v136, %v135
  %v167 = vpack.c.b16 %v138, %v137
  %v168 = vpack.c.b16 %v140, %v139
  %v169 = vpack.c.b16 %v142, %v141
  %v170 = vpack.c.b16 %v144, %v143
  %v171 = vpack.c.b16 %v146, %v145
  %v172 = vpack.c.b16 %v148, %v147
  %v173 = vpack.c.b16 %v150, %v149
  %v174 = vpack.c.b16 %v152, %v151
  %v175 = vpack.c.b16 %v154, %v153
  %v176 = vpack.c.b16 %v156, %v155
  %v177 = vpack.c.b16 %v158, %v157
  %v178 = vpack.c.b16 %v160, %v159
  %v179 = vpack.c.b16 %v162, %v161
  %v180 = vpack.c.b16 %v164, %v163
  %197 = vmatprep.subr.bf16.mxu0 0
  %198 = vmatpush1.bf16.msra.mxu0 %v172
  %199 = vmatprep.subr.bf16.mxu0 0
  %200 = vmatpush1.bf16.msra.mxu0 %v171
  %201 = vmatprep.subr.bf16.mxu0 0
  %202 = vmatpush1.bf16.msra.mxu0 %v170
  %203 = vmatprep.subr.bf16.mxu0 0
  %204 = vmatpush1.bf16.msra.mxu0 %v169
  %205 = vmatprep.subr.bf16.mxu0 0
  %206 = vmatpush1.bf16.msra.mxu0 %v168
  %207 = vmatprep.subr.bf16.mxu0 0
  %208 = vmatpush1.bf16.msra.mxu0 %v167
  %209 = vmatprep.subr.bf16.mxu0 0
  %210 = vmatpush1.bf16.msra.mxu0 %v166
  %211 = vmatprep.subr.bf16.mxu0 0
  %212 = vmatpush1.bf16.msra.mxu0 %v165
  %213 = vmatprep.subr.bf16.mxu0 0
  %214 = vmatpush2.bf16.msra.mxu0 %v180
  %215 = vmatprep.subr.bf16.mxu0 0
  %216 = vmatpush2.bf16.msra.mxu0 %v179
  %217 = vmatprep.subr.bf16.mxu0 0
  %218 = vmatpush2.bf16.msra.mxu0 %v178
  %219 = vmatprep.subr.bf16.mxu0 0
  %220 = vmatpush2.bf16.msra.mxu0 %v177
  %221 = vmatprep.subr.bf16.mxu0 0
  %222 = vmatpush2.bf16.msra.mxu0 %v176
  %223 = vmatprep.subr.bf16.mxu0 0
  %224 = vmatpush2.bf16.msra.mxu0 %v175
  %225 = vmatprep.subr.bf16.mxu0 0
  %226 = vmatpush2.bf16.msra.mxu0 %v174
  %227 = vmatprep.subr.bf16.mxu0 0
  %228 = vmatpush2.bf16.msra.mxu0 %v173
  %229 = vmatprep.mubr.bf16.mxu0 %v94
  %230 = vmatmul.mubr.bf16.gmra.mxu0 %v93
  %v231 = vpop.f32.mrf.mxu0
  %v232 = vadd.f32 %v64, %v231
  %v233 = vpop.f32.mrf.mxu0
  %v234 = vpop.f32.mrf.mxu0
  %v235 = vadd.f32 %v69, %v234
  %v236 = vpop.f32.mrf.mxu0
  %237 = vmatprep.mubr.bf16.mxu0 %v96
  %238 = vmatmul.mubr.bf16.gmra.mxu0 %v95
  %v239 = vpop.f32.mrf.mxu0
  %v240 = vadd.f32 %v74, %v239
  %v241 = vpop.f32.mrf.mxu0
  %v242 = vpop.f32.mrf.mxu0
  %v243 = vadd.f32 %v79, %v242
  %v244 = vpop.f32.mrf.mxu0
  %245 = vdwg.mxu0
  %246 = vadd.xlane.f32.xlu0 %v232
  %v247 = vpop.xlane.xlu0 %246
  %248 = vadd.xlane.f32.xlu0 %v235
  %v249 = vpop.xlane.xlu0 %248
  %250 = vadd.xlane.f32.xlu0 %v240
  %v251 = vpop.xlane.xlu0 %250
  %252 = vadd.xlane.f32.xlu0 %v243
  %v253 = vpop.xlane.xlu0 %252
  %v254 = vrcp.pop 128.0
  %v255 = vmul.f32 %v247, %v254
  %v256 = vmul.f32 %v249, %v254
  %v257 = vmul.f32 %v251, %v254
  %v258 = vmul.f32 %v253, %v254
  %v259 = vsub.f32 %v232, %v255
  %v260 = vsub.f32 %v235, %v256
  %v261 = vsub.f32 %v240, %v257
  %v262 = vsub.f32 %v243, %v258
  %v263 = vmul.f32 %v259, %v259
  %v264 = vmul.f32 %v260, %v260
  %v265 = vmul.f32 %v261, %v261
  %v266 = vmul.f32 %v262, %v262
  %267 = vadd.xlane.f32.xlu0 %v263
  %v268 = vpop.xlane.xlu0 %267
  %269 = vadd.xlane.f32.xlu0 %v264
  %v270 = vpop.xlane.xlu0 %269
  %271 = vadd.xlane.f32.xlu0 %v265
  %v272 = vpop.xlane.xlu0 %271
  %273 = vadd.xlane.f32.xlu0 %v266
  %v274 = vpop.xlane.xlu0 %273
  %v275 = vmul.f32 %v268, %v254
  %v276 = vmul.f32 %v270, %v254
  %v277 = vmul.f32 %v272, %v254
  %v278 = vmul.f32 %v274, %v254
  %v279 = vmax.f32 %v275, 0.0
  %v280 = vmax.f32 %v276, 0.0
  %v281 = vmax.f32 %v277, 0.0
  %v282 = vmax.f32 %v278, 0.0
  %v283 = vadd.f32 %v279, 1e-05
  %v284 = vadd.f32 %v280, 1e-05
  %v285 = vadd.f32 %v281, 1e-05
  %v286 = vadd.f32 %v282, 1e-05
  %v287 = vrsqrt.pop %v283
  %v288 = vrsqrt.pop %v284
  %v289 = vrsqrt.pop %v285
  %v290 = vrsqrt.pop %v286
  %v291 = vld [vmem:[%s3] sm:$0xff]
  %v292 = vld [vmem:[%s3 + $0x8] sm:$0xff]
  %v293 = vld [vmem:[%s3 + $0x10] sm:$0xff]
  %v294 = vld [vmem:[%s3 + $0x18] sm:$0xff]
  %v295 = vmul.f32 %v287, %v291
  %v296 = vmul.f32 %v288, %v292
  %v297 = vmul.f32 %v289, %v293
  %v298 = vmul.f32 %v290, %v294
  %v299 = vld [vmem:[%s4] sm:$0xff]
  %v300 = vld [vmem:[%s4 + $0x8] sm:$0xff]
  %v301 = vld [vmem:[%s4 + $0x10] sm:$0xff]
  %v302 = vld [vmem:[%s4 + $0x18] sm:$0xff]
  %v303 = vmul.f32 %v255, %v295
  %v304 = vmul.f32 %v256, %v296
  %v305 = vmul.f32 %v257, %v297
  %v306 = vmul.f32 %v258, %v298
  %v307 = vsub.f32 %v299, %v303
  %v308 = vsub.f32 %v300, %v304
  %v309 = vsub.f32 %v301, %v305
  %v310 = vsub.f32 %v302, %v306
  %312 = vset.pattern.permute.xlu0 0
  %313 = vperm.xlu0 %312, %v295
  %v314 = vpop.permute.xlu0 %313
  %317 = vset.pattern.permute.xlu0 0
  %318 = vperm.xlu0 %317, %v296
  %v319 = vpop.permute.xlu0 %318
  %322 = vset.pattern.permute.xlu0 0
  %323 = vperm.xlu0 %322, %v297
  %v324 = vpop.permute.xlu0 %323
  %327 = vset.pattern.permute.xlu0 0
  %328 = vperm.xlu0 %327, %v298
  %v329 = vpop.permute.xlu0 %328
  %v331 = vmul.f32 %v232, %v314
  %v332 = vmul.f32 %v235, %v319
  %v333 = vmul.f32 %v240, %v324
  %v334 = vmul.f32 %v243, %v329
  %336 = vset.pattern.permute.xlu0 0
  %337 = vperm.xlu0 %336, %v307
  %v338 = vpop.permute.xlu0 %337
  %341 = vset.pattern.permute.xlu0 0
  %342 = vperm.xlu0 %341, %v308
  %v343 = vpop.permute.xlu0 %342
  %346 = vset.pattern.permute.xlu0 0
  %347 = vperm.xlu0 %346, %v309
  %v348 = vpop.permute.xlu0 %347
  %351 = vset.pattern.permute.xlu0 0
  %352 = vperm.xlu0 %351, %v310
  %v353 = vpop.permute.xlu0 %352
  %v355 = vadd.f32 %v331, %v338
  %v356 = vadd.f32 %v332, %v343
  %v357 = vadd.f32 %v333, %v348
  %v358 = vadd.f32 %v334, %v353
  %v359 = vmul.f32 %v355, 0.2
  %v360 = vmul.f32 %v356, 0.2
  %v361 = vmul.f32 %v357, 0.2
  %v362 = vmul.f32 %v358, 0.2
  %v363 = vmax.f32 %v355, %v359
  %v364 = vmax.f32 %v356, %v360
  %v365 = vmax.f32 %v357, %v361
  %v366 = vmax.f32 %v358, %v362
  %v367 = vpack.c.bf16 %v364, %v363
  %v368 = vpack.c.bf16 %v366, %v365
  %v371 = vunpack.c.l.b16 %v367
  %v372 = vunpack.c.h.b16 %v367
  %v373 = vunpack.c.l.b16 %v368
  %v374 = vunpack.c.h.b16 %v368
  %v375 = vpack.c.b16 %v371, %v371
  %v376 = vpack.c.b16 %v372, %v372
  %v377 = vpack.c.b16 %v373, %v373
  %v378 = vpack.c.b16 %v374, %v374
  %383 = vst [vmem:[%s5] sm:$0xf] %v375
  %384 = vst [vmem:[%s5 + $0x4] sm:$0xf] %v376
  %385 = vst [vmem:[%s5 + $0x8] sm:$0xf] %v377
  %386 = vst [vmem:[%s5 + $0xc] sm:$0xf] %v378
  // Predicated region
  $region22: #{discriminator_forward.6} parent=0 // pred_check
    _
  $region23: #{discriminator_forward.6} parent=0 // pred_check_branch
    %388 = sbr.rel (0) target = $region25
  $region24: #{discriminator_forward.6} parent=0 // pred_region
    _
  $region25: #{discriminator_forward.6} parent=0 // pred_fallthru
    _
  // Predicated region
  $region26: #{discriminator_forward.6} parent=0 // pred_check
    _
  $region27: #{discriminator_forward.6} parent=0 // pred_check_branch
    %390 = sbr.rel (0) target = $region29
  $region28: #{discriminator_forward.6} parent=0 // pred_region
    _
  $region29: #{discriminator_forward.6} parent=0 // pred_fallthru
    _

// kernel: discriminator_forward.7
$region0: #{discriminator_forward.7}
  #allocation0 [shape = 'u32[]', space=smem, size = 0x4, offset = 0x4, fixed_abs, tag = 'smem constant byte address 0x4 - core index']
  #allocation1 [shape = 'u32[144,128]{1,0:T(1,128)}', space=vmem, size = 0x12000, scoped, tag = 'internal scratch']
  %s0 = inlined_call_operand.vmem [shape: bf16[64,512], index: 0, kind: input, shape index: {}]
  %s1 = inlined_call_operand.vmem [shape: bf16[512,32], index: 1, kind: input, shape index: {}]
  %s2 = inlined_call_operand.vmem [shape: f32[64,1], index: 2, kind: input, shape index: {}]
  %s3 = inlined_call_operand.vmem [shape: f32[64,1], index: 3, kind: input, shape index: {}]
  %s4 = inlined_call_operand.vmem [shape: f32[64,1], index: 4, kind: input, shape index: {}]
  %s5 = inlined_call_operand.vmem [shape: f32[64,32], index: 5, kind: input, shape index: {}]
  %s6 = inlined_call_operand.vmem [shape: f32[32,2], index: 6, kind: input, shape index: {}]
  %s7 = inlined_call_operand.hbm [shape: f32[1,2], index: 7, kind: output, shape index: {}]
  %s8 = sld [smem:[#allocation0]]
  $region38: #{discriminator_forward.7} parent=0
    _
  %s10 = ssub.s32 1, %s8
  %s11 = scalar_select 0, %s10, %s8
  $region1: #{discriminator_forward.7} parent=0
    #allocation2 [shape = 'u8[512]{0}', space=vmem, size = 0x400, scoped, tag = 'output window, operand 0, single buffered']
    #allocation3 [shape = 's32[1]{0}', space=sflag, size = 0x4, scoped, tag = 'scoped memory for discriminator_forward.7']
    %12 = vsyncpa [#allocation3], 0
    // Predicated region
    $region2: #{discriminator_forward.7} parent=1 // pred_check
      _
    $region3: #{discriminator_forward.7} parent=1 // pred_check_branch
      %14 = sbr.rel (0) target = $region5
    $region4: #{discriminator_forward.7} parent=1 // pred_region
      _
    $region5: #{discriminator_forward.7} parent=1 // pred_fallthru
      _
    // Predicated region
    $region6: #{discriminator_forward.7} parent=1 // pred_check
      _
    $region7: #{discriminator_forward.7} parent=1 // pred_check_branch
      %16 = sbr.rel (0) target = $region9
    $region8: #{discriminator_forward.7} parent=1 // pred_region
      _
    $region9: #{discriminator_forward.7} parent=1 // pred_fallthru
      _
    // Predicated region
    $region10: #{discriminator_forward.7} parent=1 // pred_check
      _
    $region11: #{discriminator_forward.7} parent=1 // pred_check_branch
      %18 = sbr.rel (0) target = $region13
    $region12: #{discriminator_forward.7} parent=1 // pred_region
      _
    $region13: #{discriminator_forward.7} parent=1 // pred_fallthru
      _
    // Predicated region
    $region14: #{discriminator_forward.7} parent=1 // pred_check
      _
    $region15: #{discriminator_forward.7} parent=1 // pred_check_branch
      %20 = sbr.rel (0) target = $region17
    $region16: #{discriminator_forward.7} parent=1 // pred_region
      _
    $region17: #{discriminator_forward.7} parent=1 // pred_fallthru
      _
    // Predicated region
    $region18: #{discriminator_forward.7} parent=1 // pred_check
      _
    $region19: #{discriminator_forward.7} parent=1 // pred_check_branch
      %22 = sbr.rel (0) target = $region21
    $region20: #{discriminator_forward.7} parent=1 // pred_region
      _
    $region21: #{discriminator_forward.7} parent=1 // pred_fallthru
      _
    // Predicated region
    $region22: #{discriminator_forward.7} parent=1 // pred_check
      _
    $region23: #{discriminator_forward.7} parent=1 // pred_check_branch
      %24 = sbr.rel (0) target = $region25
    $region24: #{discriminator_forward.7} parent=1 // pred_region
      _
    $region25: #{discriminator_forward.7} parent=1 // pred_fallthru
      _
    // Predicated region
    $region26: #{discriminator_forward.7} parent=1 // pred_check
      _
    $region27: #{discriminator_forward.7} parent=1 // pred_check_branch
      %26 = sbr.rel (0) target = $region29
    $region28: #{discriminator_forward.7} parent=1 // pred_region
      _
    $region29: #{discriminator_forward.7} parent=1 // pred_fallthru
      _
    %v28 = vld [vmem:[%s0] sm:$0xff]
    %v29 = vld [vmem:[%s0 + $0x8] sm:$0xff]
    %v30 = vld [vmem:[%s0 + $0x10] sm:$0xff]
    %v31 = vld [vmem:[%s0 + $0x18] sm:$0xff]
    %v32 = vld [vmem:[%s0 + $0x20] sm:$0xff]
    %v33 = vld [vmem:[%s0 + $0x28] sm:$0xff]
    %v34 = vld [vmem:[%s0 + $0x30] sm:$0xff]
    %v35 = vld [vmem:[%s0 + $0x38] sm:$0xff]
    %v36 = vld [vmem:[%s0 + $0x40] sm:$0xff]
    %v37 = vld [vmem:[%s0 + $0x48] sm:$0xff]
    %v38 = vld [vmem:[%s0 + $0x50] sm:$0xff]
    %v39 = vld [vmem:[%s0 + $0x58] sm:$0xff]
    %v40 = vld [vmem:[%s0 + $0x60] sm:$0xff]
    %v41 = vld [vmem:[%s0 + $0x68] sm:$0xff]
    %v42 = vld [vmem:[%s0 + $0x70] sm:$0xff]
    %v43 = vld [vmem:[%s0 + $0x78] sm:$0xff]
    %v44 = vld [vmem:[%s1] sm:$0xf]
    %v45 = vld [vmem:[%s1 + $0x4] sm:$0xf]
    %v46 = vld [vmem:[%s1 + $0x8] sm:$0xf]
    %v47 = vld [vmem:[%s1 + $0xc] sm:$0xf]
    %v48 = vld [vmem:[%s1 + $0x10] sm:$0xf]
    %v49 = vld [vmem:[%s1 + $0x14] sm:$0xf]
    %v50 = vld [vmem:[%s1 + $0x18] sm:$0xf]
    %v51 = vld [vmem:[%s1 + $0x1c] sm:$0xf]
    %v52 = vld [vmem:[%s1 + $0x20] sm:$0xf]
    %v53 = vld [vmem:[%s1 + $0x24] sm:$0xf]
    %v54 = vld [vmem:[%s1 + $0x28] sm:$0xf]
    %v55 = vld [vmem:[%s1 + $0x2c] sm:$0xf]
    %v56 = vld [vmem:[%s1 + $0x30] sm:$0xf]
    %v57 = vld [vmem:[%s1 + $0x34] sm:$0xf]
    %v58 = vld [vmem:[%s1 + $0x38] sm:$0xf]
    %v59 = vld [vmem:[%s1 + $0x3c] sm:$0xf]
    %v60 = vld [vmem:[%s1 + $0x40] sm:$0xf]
    %v61 = vld [vmem:[%s1 + $0x44] sm:$0xf]
    %v62 = vld [vmem:[%s1 + $0x48] sm:$0xf]
    %v63 = vld [vmem:[%s1 + $0x4c] sm:$0xf]
    %v64 = vld [vmem:[%s1 + $0x50] sm:$0xf]
    %v65 = vld [vmem:[%s1 + $0x54] sm:$0xf]
    %v66 = vld [vmem:[%s1 + $0x58] sm:$0xf]
    %v67 = vld [vmem:[%s1 + $0x5c] sm:$0xf]
    %v68 = vld [vmem:[%s1 + $0x60] sm:$0xf]
    %v69 = vld [vmem:[%s1 + $0x64] sm:$0xf]
    %v70 = vld [vmem:[%s1 + $0x68] sm:$0xf]
    %v71 = vld [vmem:[%s1 + $0x6c] sm:$0xf]
    %v72 = vld [vmem:[%s1 + $0x70] sm:$0xf]
    %v73 = vld [vmem:[%s1 + $0x74] sm:$0xf]
    %v74 = vld [vmem:[%s1 + $0x78] sm:$0xf]
    %v75 = vld [vmem:[%s1 + $0x7c] sm:$0xf]
    %v76 = vld [vmem:[%s1 + $0x80] sm:$0xf]
    %v77 = vld [vmem:[%s1 + $0x84] sm:$0xf]
    %v78 = vld [vmem:[%s1 + $0x88] sm:$0xf]
    %v79 = vld [vmem:[%s1 + $0x8c] sm:$0xf]
    %v80 = vld [vmem:[%s1 + $0x90] sm:$0xf]
    %v81 = vld [vmem:[%s1 + $0x94] sm:$0xf]
    %v82 = vld [vmem:[%s1 + $0x98] sm:$0xf]
    %v83 = vld [vmem:[%s1 + $0x9c] sm:$0xf]
    %v84 = vld [vmem:[%s1 + $0xa0] sm:$0xf]
    %v85 = vld [vmem:[%s1 + $0xa4] sm:$0xf]
    %v86 = vld [vmem:[%s1 + $0xa8] sm:$0xf]
    %v87 = vld [vmem:[%s1 + $0xac] sm:$0xf]
    %v88 = vld [vmem:[%s1 + $0xb0] sm:$0xf]
    %v89 = vld [vmem:[%s1 + $0xb4] sm:$0xf]
    %v90 = vld [vmem:[%s1 + $0xb8] sm:$0xf]
    %v91 = vld [vmem:[%s1 + $0xbc] sm:$0xf]
    %v92 = vld [vmem:[%s1 + $0xc0] sm:$0xf]
    %v93 = vld [vmem:[%s1 + $0xc4] sm:$0xf]
    %v94 = vld [vmem:[%s1 + $0xc8] sm:$0xf]
    %v95 = vld [vmem:[%s1 + $0xcc] sm:$0xf]
    %v96 = vld [vmem:[%s1 + $0xd0] sm:$0xf]
    %v97 = vld [vmem:[%s1 + $0xd4] sm:$0xf]
    %v98 = vld [vmem:[%s1 + $0xd8] sm:$0xf]
    %v99 = vld [vmem:[%s1 + $0xdc] sm:$0xf]
    %v100 = vld [vmem:[%s1 + $0xe0] sm:$0xf]
    %v101 = vld [vmem:[%s1 + $0xe4] sm:$0xf]
    %v102 = vld [vmem:[%s1 + $0xe8] sm:$0xf]
    %v103 = vld [vmem:[%s1 + $0xec] sm:$0xf]
    %v104 = vld [vmem:[%s1 + $0xf0] sm:$0xf]
    %v105 = vld [vmem:[%s1 + $0xf4] sm:$0xf]
    %v106 = vld [vmem:[%s1 + $0xf8] sm:$0xf]
    %v107 = vld [vmem:[%s1 + $0xfc] sm:$0xf]
    %v108 = vld [vmem:[%s2] sm:$0xff]
    %v109 = vld [vmem:[%s2 + $0x8] sm:$0xff]
    %v110 = vld [vmem:[%s2 + $0x10] sm:$0xff]
    %v111 = vld [vmem:[%s2 + $0x18] sm:$0xff]
    %v112 = vld [vmem:[%s2 + $0x20] sm:$0xff]
    %v113 = vld [vmem:[%s2 + $0x28] sm:$0xff]
    %v114 = vld [vmem:[%s2 + $0x30] sm:$0xff]
    %v115 = vld [vmem:[%s2 + $0x38] sm:$0xff]
    %117 = vset.pattern.permute.xlu0 0
    %118 = vperm.xlu0 %117, %v108
    %v119 = vpop.permute.xlu0 %118
    %122 = vset.pattern.permute.xlu0 0
    %123 = vperm.xlu0 %122, %v109
    %v124 = vpop.permute.xlu0 %123
    %127 = vset.pattern.permute.xlu0 0
    %128 = vperm.xlu0 %127, %v110
    %v129 = vpop.permute.xlu0 %128
    %132 = vset.pattern.permute.xlu0 0
    %133 = vperm.xlu0 %132, %v111
    %v134 = vpop.permute.xlu0 %133
    %137 = vset.pattern.permute.xlu0 0
    %138 = vperm.xlu0 %137, %v112
    %v139 = vpop.permute.xlu0 %138
    %142 = vset.pattern.permute.xlu0 0
    %143 = vperm.xlu0 %142, %v113
    %v144 = vpop.permute.xlu0 %143
    %147 = vset.pattern.permute.xlu0 0
    %148 = vperm.xlu0 %147, %v114
    %v149 = vpop.permute.xlu0 %148
    %152 = vset.pattern.permute.xlu0 0
    %153 = vperm.xlu0 %152, %v115
    %v154 = vpop.permute.xlu0 %153
    %v172 = vunpack.c.l.b16 %v28
    %v173 = vunpack.c.h.b16 %v28
    %v174 = vunpack.c.l.b16 %v29
    %v175 = vunpack.c.h.b16 %v29
    %v176 = vunpack.c.l.b16 %v30
    %v177 = vunpack.c.h.b16 %v30
    %v178 = vunpack.c.l.b16 %v31
    %v179 = vunpack.c.h.b16 %v31
    %v180 = vunpack.c.l.b16 %v32
    %v181 = vunpack.c.h.b16 %v32
    %v182 = vunpack.c.l.b16 %v33
    %v183 = vunpack.c.h.b16 %v33
    %v184 = vunpack.c.l.b16 %v34
    %v185 = vunpack.c.h.b16 %v34
    %v186 = vunpack.c.l.b16 %v35
    %v187 = vunpack.c.h.b16 %v35
    %v188 = vunpack.c.l.b16 %v36
    %v189 = vunpack.c.h.b16 %v36
    %v190 = vunpack.c.l.b16 %v37
    %v191 = vunpack.c.h.b16 %v37
    %v192 = vunpack.c.l.b16 %v38
    %v193 = vunpack.c.h.b16 %v38
    %v194 = vunpack.c.l.b16 %v39
    %v195 = vunpack.c.h.b16 %v39
    %v196 = vunpack.c.l.b16 %v40
    %v197 = vunpack.c.h.b16 %v40
    %v198 = vunpack.c.l.b16 %v41
    %v199 = vunpack.c.h.b16 %v41
    %v200 = vunpack.c.l.b16 %v42
    %v201 = vunpack.c.h.b16 %v42
    %v202 = vunpack.c.l.b16 %v43
    %v203 = vunpack.c.h.b16 %v43
    %v204 = vpack.c.b16 %v176, %v172
    %v205 = vpack.c.b16 %v177, %v173
    %v206 = vpack.c.b16 %v178, %v174
    %v207 = vpack.c.b16 %v179, %v175
    %v208 = vpack.c.b16 %v184, %v180
    %v209 = vpack.c.b16 %v185, %v181
    %v210 = vpack.c.b16 %v186, %v182
    %v211 = vpack.c.b16 %v187, %v183
    %v212 = vpack.c.b16 %v192, %v188
    %v213 = vpack.c.b16 %v193, %v189
    %v214 = vpack.c.b16 %v194, %v190
    %v215 = vpack.c.b16 %v195, %v191
    %v216 = vpack.c.b16 %v200, %v196
    %v217 = vpack.c.b16 %v201, %v197
    %v218 = vpack.c.b16 %v202, %v198
    %v219 = vpack.c.b16 %v203, %v199
    %v300 = vunpack.c.l.b16 %v44
    %v301 = vunpack.c.l.b16 %v45
    %v302 = vunpack.c.l.b16 %v46
    %v303 = vunpack.c.l.b16 %v47
    %v304 = vunpack.c.l.b16 %v48
    %v305 = vunpack.c.l.b16 %v49
    %v306 = vunpack.c.l.b16 %v50
    %v307 = vunpack.c.l.b16 %v51
    %v308 = vunpack.c.l.b16 %v52
    %v309 = vunpack.c.l.b16 %v53
    %v310 = vunpack.c.l.b16 %v54
    %v311 = vunpack.c.l.b16 %v55
    %v312 = vunpack.c.l.b16 %v56
    %v313 = vunpack.c.l.b16 %v57
    %v314 = vunpack.c.l.b16 %v58
    %v315 = vunpack.c.l.b16 %v59
    %v316 = vunpack.c.l.b16 %v60
    %v317 = vunpack.c.l.b16 %v61
    %v318 = vunpack.c.l.b16 %v62
    %v319 = vunpack.c.l.b16 %v63
    %v320 = vunpack.c.l.b16 %v64
    %v321 = vunpack.c.l.b16 %v65
    %v322 = vunpack.c.l.b16 %v66
    %v323 = vunpack.c.l.b16 %v67
    %v324 = vunpack.c.l.b16 %v68
    %v325 = vunpack.c.l.b16 %v69
    %v326 = vunpack.c.l.b16 %v70
    %v327 = vunpack.c.l.b16 %v71
    %v328 = vunpack.c.l.b16 %v72
    %v329 = vunpack.c.l.b16 %v73
    %v330 = vunpack.c.l.b16 %v74
    %v331 = vunpack.c.l.b16 %v75
    %v332 = vunpack.c.l.b16 %v76
    %v333 = vunpack.c.l.b16 %v77
    %v334 = vunpack.c.l.b16 %v78
    %v335 = vunpack.c.l.b16 %v79
    %v336 = vunpack.c.l.b16 %v80
    %v337 = vunpack.c.l.b16 %v81
    %v338 = vunpack.c.l.b16 %v82
    %v339 = vunpack.c.l.b16 %v83
    %v340 = vunpack.c.l.b16 %v84
    %v341 = vunpack.c.l.b16 %v85
    %v342 = vunpack.c.l.b16 %v86
    %v343 = vunpack.c.l.b16 %v87
    %v344 = vunpack.c.l.b16 %v88
    %v345 = vunpack.c.l.b16 %v89
    %v346 = vunpack.c.l.b16 %v90
    %v347 = vunpack.c.l.b16 %v91
    %v348 = vunpack.c.l.b16 %v92
    %v349 = vunpack.c.l.b16 %v93
    %v350 = vunpack.c.l.b16 %v94
    %v351 = vunpack.c.l.b16 %v95
    %v352 = vunpack.c.l.b16 %v96
    %v353 = vunpack.c.l.b16 %v97
    %v354 = vunpack.c.l.b16 %v98
    %v355 = vunpack.c.l.b16 %v99
    %v356 = vunpack.c.l.b16 %v100
    %v357 = vunpack.c.l.b16 %v101
    %v358 = vunpack.c.l.b16 %v102
    %v359 = vunpack.c.l.b16 %v103
    %v360 = vunpack.c.l.b16 %v104
    %v361 = vunpack.c.l.b16 %v105
    %v362 = vunpack.c.l.b16 %v106
    %v363 = vunpack.c.l.b16 %v107
    %v364 = vpack.c.b16 %v301, %v300
    %v365 = vpack.c.b16 %v303, %v302
    %v366 = vpack.c.b16 %v305, %v304
    %v367 = vpack.c.b16 %v307, %v306
    %v368 = vpack.c.b16 %v309, %v308
    %v369 = vpack.c.b16 %v311, %v310
    %v370 = vpack.c.b16 %v313, %v312
    %v371 = vpack.c.b16 %v315, %v314
    %v372 = vpack.c.b16 %v317, %v316
    %v373 = vpack.c.b16 %v319, %v318
    %v374 = vpack.c.b16 %v321, %v320
    %v375 = vpack.c.b16 %v323, %v322
    %v376 = vpack.c.b16 %v325, %v324
    %v377 = vpack.c.b16 %v327, %v326
    %v378 = vpack.c.b16 %v329, %v328
    %v379 = vpack.c.b16 %v331, %v330
    %v380 = vpack.c.b16 %v333, %v332
    %v381 = vpack.c.b16 %v335, %v334
    %v382 = vpack.c.b16 %v337, %v336
    %v383 = vpack.c.b16 %v339, %v338
    %v384 = vpack.c.b16 %v341, %v340
    %v385 = vpack.c.b16 %v343, %v342
    %v386 = vpack.c.b16 %v345, %v344
    %v387 = vpack.c.b16 %v347, %v346
    %v388 = vpack.c.b16 %v349, %v348
    %v389 = vpack.c.b16 %v351, %v350
    %v390 = vpack.c.b16 %v353, %v352
    %v391 = vpack.c.b16 %v355, %v354
    %v392 = vpack.c.b16 %v357, %v356
    %v393 = vpack.c.b16 %v359, %v358
    %v394 = vpack.c.b16 %v361, %v360
    %v395 = vpack.c.b16 %v363, %v362
    %428 = vmatprep.subr.bf16.mxu0 0
    %429 = vmatpush1.bf16.msra.mxu0 %v371
    %430 = vmatprep.subr.bf16.mxu0 0
    %431 = vmatpush1.bf16.msra.mxu0 %v370
    %432 = vmatprep.subr.bf16.mxu0 0
    %433 = vmatpush1.bf16.msra.mxu0 %v369
    %434 = vmatprep.subr.bf16.mxu0 0
    %435 = vmatpush1.bf16.msra.mxu0 %v368
    %436 = vmatprep.subr.bf16.mxu0 0
    %437 = vmatpush1.bf16.msra.mxu0 %v367
    %438 = vmatprep.subr.bf16.mxu0 0
    %439 = vmatpush1.bf16.msra.mxu0 %v366
    %440 = vmatprep.subr.bf16.mxu0 0
    %441 = vmatpush1.bf16.msra.mxu0 %v365
    %442 = vmatprep.subr.bf16.mxu0 0
    %443 = vmatpush1.bf16.msra.mxu0 %v364
    %444 = vmatprep.subr.bf16.mxu0 0
    %445 = vmatpush2.bf16.msra.mxu0 %v379
    %446 = vmatprep.subr.bf16.mxu0 0
    %447 = vmatpush2.bf16.msra.mxu0 %v378
    %448 = vmatprep.subr.bf16.mxu0 0
    %449 = vmatpush2.bf16.msra.mxu0 %v377
    %450 = vmatprep.subr.bf16.mxu0 0
    %451 = vmatpush2.bf16.msra.mxu0 %v376
    %452 = vmatprep.subr.bf16.mxu0 0
    %453 = vmatpush2.bf16.msra.mxu0 %v375
    %454 = vmatprep.subr.bf16.mxu0 0
    %455 = vmatpush2.bf16.msra.mxu0 %v374
    %456 = vmatprep.subr.bf16.mxu0 0
    %457 = vmatpush2.bf16.msra.mxu0 %v373
    %458 = vmatprep.subr.bf16.mxu0 0
    %459 = vmatpush2.bf16.msra.mxu0 %v372
    %460 = vmatprep.mubr.bf16.mxu0 %v205
    %461 = vmatmul.mubr.bf16.gmra.mxu0 %v204
    %v462 = vpop.f32.mrf.mxu0
    %v463 = vadd.f32 %v119, %v462
    %v464 = vpop.f32.mrf.mxu0
    %v465 = vpop.f32.mrf.mxu0
    %v466 = vadd.f32 %v124, %v465
    %v467 = vpop.f32.mrf.mxu0
    %468 = vmatprep.mubr.bf16.mxu0 %v209
    %469 = vmatmul.mubr.bf16.gmra.mxu0 %v208
    %v470 = vpop.f32.mrf.mxu0
    %v471 = vadd.f32 %v129, %v470
    %v472 = vpop.f32.mrf.mxu0
    %v473 = vpop.f32.mrf.mxu0
    %v474 = vadd.f32 %v134, %v473
    %v475 = vpop.f32.mrf.mxu0
    %476 = vmatprep.mubr.bf16.mxu0 %v213
    %477 = vmatmul.mubr.bf16.gmra.mxu0 %v212
    %v478 = vpop.f32.mrf.mxu0
    %v479 = vadd.f32 %v139, %v478
    %v480 = vpop.f32.mrf.mxu0
    %v481 = vpop.f32.mrf.mxu0
    %v482 = vadd.f32 %v144, %v481
    %v483 = vpop.f32.mrf.mxu0
    %484 = vmatprep.mubr.bf16.mxu0 %v217
    %485 = vmatmul.mubr.bf16.gmra.mxu0 %v216
    %v486 = vpop.f32.mrf.mxu0
    %v487 = vadd.f32 %v149, %v486
    %v488 = vpop.f32.mrf.mxu0
    %v489 = vpop.f32.mrf.mxu0
    %v490 = vadd.f32 %v154, %v489
    %v491 = vpop.f32.mrf.mxu0
    %492 = vdwg.mxu0
    %493 = vmatprep.subr.bf16.mxu0 0
    %494 = vmatpush1.bf16.msra.mxu0 %v387
    %495 = vmatprep.subr.bf16.mxu0 0
    %496 = vmatpush1.bf16.msra.mxu0 %v386
    %497 = vmatprep.subr.bf16.mxu0 0
    %498 = vmatpush1.bf16.msra.mxu0 %v385
    %499 = vmatprep.subr.bf16.mxu0 0
    %500 = vmatpush1.bf16.msra.mxu0 %v384
    %501 = vmatprep.subr.bf16.mxu0 0
    %502 = vmatpush1.bf16.msra.mxu0 %v383
    %503 = vmatprep.subr.bf16.mxu0 0
    %504 = vmatpush1.bf16.msra.mxu0 %v382
    %505 = vmatprep.subr.bf16.mxu0 0
    %506 = vmatpush1.bf16.msra.mxu0 %v381
    %507 = vmatprep.subr.bf16.mxu0 0
    %508 = vmatpush1.bf16.msra.mxu0 %v380
    %509 = vmatprep.subr.bf16.mxu0 0
    %510 = vmatpush2.bf16.msra.mxu0 %v395
    %511 = vmatprep.subr.bf16.mxu0 0
    %512 = vmatpush2.bf16.msra.mxu0 %v394
    %513 = vmatprep.subr.bf16.mxu0 0
    %514 = vmatpush2.bf16.msra.mxu0 %v393
    %515 = vmatprep.subr.bf16.mxu0 0
    %516 = vmatpush2.bf16.msra.mxu0 %v392
    %517 = vmatprep.subr.bf16.mxu0 0
    %518 = vmatpush2.bf16.msra.mxu0 %v391
    %519 = vmatprep.subr.bf16.mxu0 0
    %520 = vmatpush2.bf16.msra.mxu0 %v390
    %521 = vmatprep.subr.bf16.mxu0 0
    %522 = vmatpush2.bf16.msra.mxu0 %v389
    %523 = vmatprep.subr.bf16.mxu0 0
    %524 = vmatpush2.bf16.msra.mxu0 %v388
    %525 = vmatprep.mubr.bf16.mxu0 %v207
    %526 = vmatmul.mubr.bf16.gmra.mxu0 %v206
    %v527 = vpop.f32.mrf.mxu0
    %v528 = vadd.f32 %v463, %v527
    %v529 = vpop.f32.mrf.mxu0
    %v530 = vpop.f32.mrf.mxu0
    %v531 = vadd.f32 %v466, %v530
    %v532 = vpop.f32.mrf.mxu0
    %533 = vmatprep.mubr.bf16.mxu0 %v211
    %534 = vmatmul.mubr.bf16.gmra.mxu0 %v210
    %v535 = vpop.f32.mrf.mxu0
    %v536 = vadd.f32 %v471, %v535
    %v537 = vpop.f32.mrf.mxu0
    %v538 = vpop.f32.mrf.mxu0
    %v539 = vadd.f32 %v474, %v538
    %v540 = vpop.f32.mrf.mxu0
    %541 = vmatprep.mubr.bf16.mxu0 %v215
    %542 = vmatmul.mubr.bf16.gmra.mxu0 %v214
    %v543 = vpop.f32.mrf.mxu0
    %v544 = vadd.f32 %v479, %v543
    %v545 = vpop.f32.mrf.mxu0
    %v546 = vpop.f32.mrf.mxu0
    %v547 = vadd.f32 %v482, %v546
    %v548 = vpop.f32.mrf.mxu0
    %549 = vmatprep.mubr.bf16.mxu0 %v219
    %550 = vmatmul.mubr.bf16.gmra.mxu0 %v218
    %v551 = vpop.f32.mrf.mxu0
    %v552 = vadd.f32 %v487, %v551
    %v553 = vpop.f32.mrf.mxu0
    %v554 = vpop.f32.mrf.mxu0
    %v555 = vadd.f32 %v490, %v554
    %v556 = vpop.f32.mrf.mxu0
    %557 = vdwg.mxu0
    %vm558 = vcmask 261120
    %v559 = vsel %vm558, %v528, 0.0
    %560 = vadd.xlane.f32.xlu0 %v559
    %v561 = vpop.xlane.xlu0 %560
    %v562 = vsel %vm558, %v531, 0.0
    %563 = vadd.xlane.f32.xlu0 %v562
    %v564 = vpop.xlane.xlu0 %563
    %v565 = vsel %vm558, %v536, 0.0
    %566 = vadd.xlane.f32.xlu0 %v565
    %v567 = vpop.xlane.xlu0 %566
    %v568 = vsel %vm558, %v539, 0.0
    %569 = vadd.xlane.f32.xlu0 %v568
    %v570 = vpop.xlane.xlu0 %569
    %v571 = vsel %vm558, %v544, 0.0
    %572 = vadd.xlane.f32.xlu0 %v571
    %v573 = vpop.xlane.xlu0 %572
    %v574 = vsel %vm558, %v547, 0.0
    %575 = vadd.xlane.f32.xlu0 %v574
    %v576 = vpop.xlane.xlu0 %575
    %v577 = vsel %vm558, %v552, 0.0
    %578 = vadd.xlane.f32.xlu0 %v577
    %v579 = vpop.xlane.xlu0 %578
    %v580 = vsel %vm558, %v555, 0.0
    %581 = vadd.xlane.f32.xlu0 %v580
    %v582 = vpop.xlane.xlu0 %581
    %v583 = vrcp.pop 32.0
    %v584 = vmul.f32 %v561, %v583
    %v585 = vmul.f32 %v564, %v583
    %v586 = vmul.f32 %v567, %v583
    %v587 = vmul.f32 %v570, %v583
    %v588 = vmul.f32 %v573, %v583
    %v589 = vmul.f32 %v576, %v583
    %v590 = vmul.f32 %v579, %v583
    %v591 = vmul.f32 %v582, %v583
    %v592 = vsub.f32 %v528, %v584
    %v593 = vsub.f32 %v531, %v585
    %v594 = vsub.f32 %v536, %v586
    %v595 = vsub.f32 %v539, %v587
    %v596 = vsub.f32 %v544, %v588
    %v597 = vsub.f32 %v547, %v589
    %v598 = vsub.f32 %v552, %v590
    %v599 = vsub.f32 %v555, %v591
    %v600 = vmul.f32 %v592, %v592
    %v601 = vmul.f32 %v593, %v593
    %v602 = vmul.f32 %v594, %v594
    %v603 = vmul.f32 %v595, %v595
    %v604 = vmul.f32 %v596, %v596
    %v605 = vmul.f32 %v597, %v597
    %v606 = vmul.f32 %v598, %v598
    %v607 = vmul.f32 %v599, %v599
    %v608 = vsel %vm558, %v600, 0.0
    %609 = vadd.xlane.f32.xlu0 %v608
    %v610 = vpop.xlane.xlu0 %609
    %v611 = vsel %vm558, %v601, 0.0
    %612 = vadd.xlane.f32.xlu0 %v611
    %v613 = vpop.xlane.xlu0 %612
    %v614 = vsel %vm558, %v602, 0.0
    %615 = vadd.xlane.f32.xlu0 %v614
    %v616 = vpop.xlane.xlu0 %615
    %v617 = vsel %vm558, %v603, 0.0
    %618 = vadd.xlane.f32.xlu0 %v617
    %v619 = vpop.xlane.xlu0 %618
    %v620 = vsel %vm558, %v604, 0.0
    %621 = vadd.xlane.f32.xlu0 %v620
    %v622 = vpop.xlane.xlu0 %621
    %v623 = vsel %vm558, %v605, 0.0
    %624 = vadd.xlane.f32.xlu0 %v623
    %v625 = vpop.xlane.xlu0 %624
    %v626 = vsel %vm558, %v606, 0.0
    %627 = vadd.xlane.f32.xlu0 %v626
    %v628 = vpop.xlane.xlu0 %627
    %v629 = vsel %vm558, %v607, 0.0
    %630 = vadd.xlane.f32.xlu0 %v629
    %v631 = vpop.xlane.xlu0 %630
    %v632 = vmul.f32 %v610, %v583
    %v633 = vmul.f32 %v613, %v583
    %v634 = vmul.f32 %v616, %v583
    %v635 = vmul.f32 %v619, %v583
    %v636 = vmul.f32 %v622, %v583
    %v637 = vmul.f32 %v625, %v583
    %v638 = vmul.f32 %v628, %v583
    %v639 = vmul.f32 %v631, %v583
    %v640 = vmax.f32 %v632, 0.0
    %v641 = vmax.f32 %v633, 0.0
    %v642 = vmax.f32 %v634, 0.0
    %v643 = vmax.f32 %v635, 0.0
    %v644 = vmax.f32 %v636, 0.0
    %v645 = vmax.f32 %v637, 0.0
    %v646 = vmax.f32 %v638, 0.0
    %v647 = vmax.f32 %v639, 0.0
    %v648 = vadd.f32 %v640, 1e-05
    %v649 = vadd.f32 %v641, 1e-05
    %v650 = vadd.f32 %v642, 1e-05
    %v651 = vadd.f32 %v643, 1e-05
    %v652 = vadd.f32 %v644, 1e-05
    %v653 = vadd.f32 %v645, 1e-05
    %v654 = vadd.f32 %v646, 1e-05
    %v655 = vadd.f32 %v647, 1e-05
    %v656 = vrsqrt.pop %v648
    %v657 = vrsqrt.pop %v649
    %v658 = vrsqrt.pop %v650
    %v659 = vrsqrt.pop %v651
    %v660 = vrsqrt.pop %v652
    %v661 = vrsqrt.pop %v653
    %v662 = vrsqrt.pop %v654
    %v663 = vrsqrt.pop %v655
    %v664 = vld [vmem:[%s3] sm:$0xff]
    %v665 = vld [vmem:[%s3 + $0x8] sm:$0xff]
    %v666 = vld [vmem:[%s3 + $0x10] sm:$0xff]
    %v667 = vld [vmem:[%s3 + $0x18] sm:$0xff]
    %v668 = vld [vmem:[%s3 + $0x20] sm:$0xff]
    %v669 = vld [vmem:[%s3 + $0x28] sm:$0xff]
    %v670 = vld [vmem:[%s3 + $0x30] sm:$0xff]
    %v671 = vld [vmem:[%s3 + $0x38] sm:$0xff]
    %v672 = vmul.f32 %v656, %v664
    %v673 = vmul.f32 %v657, %v665
    %v674 = vmul.f32 %v658, %v666
    %v675 = vmul.f32 %v659, %v667
    %v676 = vmul.f32 %v660, %v668
    %v677 = vmul.f32 %v661, %v669
    %v678 = vmul.f32 %v662, %v670
    %v679 = vmul.f32 %v663, %v671
    %v680 = vld [vmem:[%s4] sm:$0xff]
    %v681 = vld [vmem:[%s4 + $0x8] sm:$0xff]
    %v682 = vld [vmem:[%s4 + $0x10] sm:$0xff]
    %v683 = vld [vmem:[%s4 + $0x18] sm:$0xff]
    %v684 = vld [vmem:[%s4 + $0x20] sm:$0xff]
    %v685 = vld [vmem:[%s4 + $0x28] sm:$0xff]
    %v686 = vld [vmem:[%s4 + $0x30] sm:$0xff]
    %v687 = vld [vmem:[%s4 + $0x38] sm:$0xff]
    %v688 = vmul.f32 %v584, %v672
    %v689 = vmul.f32 %v585, %v673
    %v690 = vmul.f32 %v586, %v674
    %v691 = vmul.f32 %v587, %v675
    %v692 = vmul.f32 %v588, %v676
    %v693 = vmul.f32 %v589, %v677
    %v694 = vmul.f32 %v590, %v678
    %v695 = vmul.f32 %v591, %v679
    %v696 = vsub.f32 %v680, %v688
    %v697 = vsub.f32 %v681, %v689
    %v698 = vsub.f32 %v682, %v690
    %v699 = vsub.f32 %v683, %v691
    %v700 = vsub.f32 %v684, %v692
    %v701 = vsub.f32 %v685, %v693
    %v702 = vsub.f32 %v686, %v694
    %v703 = vsub.f32 %v687, %v695
    %705 = vset.pattern.permute.xlu0 0
    %706 = vperm.xlu0 %705, %v672
    %v707 = vpop.permute.xlu0 %706
    %710 = vset.pattern.permute.xlu0 0
    %711 = vperm.xlu0 %710, %v673
    %v712 = vpop.permute.xlu0 %711
    %715 = vset.pattern.permute.xlu0 0
    %716 = vperm.xlu0 %715, %v674
    %v717 = vpop.permute.xlu0 %716
    %720 = vset.pattern.permute.xlu0 0
    %721 = vperm.xlu0 %720, %v675
    %v722 = vpop.permute.xlu0 %721
    %725 = vset.pattern.permute.xlu0 0
    %726 = vperm.xlu0 %725, %v676
    %v727 = vpop.permute.xlu0 %726
    %730 = vset.pattern.permute.xlu0 0
    %731 = vperm.xlu0 %730, %v677
    %v732 = vpop.permute.xlu0 %731
    %735 = vset.pattern.permute.xlu0 0
    %736 = vperm.xlu0 %735, %v678
    %v737 = vpop.permute.xlu0 %736
    %740 = vset.pattern.permute.xlu0 0
    %741 = vperm.xlu0 %740, %v679
    %v742 = vpop.permute.xlu0 %741
    %v744 = vmul.f32 %v528, %v707
    %v745 = vmul.f32 %v531, %v712
    %v746 = vmul.f32 %v536, %v717
    %v747 = vmul.f32 %v539, %v722
    %v748 = vmul.f32 %v544, %v727
    %v749 = vmul.f32 %v547, %v732
    %v750 = vmul.f32 %v552, %v737
    %v751 = vmul.f32 %v555, %v742
    %753 = vset.pattern.permute.xlu0 0
    %754 = vperm.xlu0 %753, %v696
    %v755 = vpop.permute.xlu0 %754
    %758 = vset.pattern.permute.xlu0 0
    %759 = vperm.xlu0 %758, %v697
    %v760 = vpop.permute.xlu0 %759
    %763 = vset.pattern.permute.xlu0 0
    %764 = vperm.xlu0 %763, %v698
    %v765 = vpop.permute.xlu0 %764
    %768 = vset.pattern.permute.xlu0 0
    %769 = vperm.xlu0 %768, %v699
    %v770 = vpop.permute.xlu0 %769
    %773 = vset.pattern.permute.xlu0 0
    %774 = vperm.xlu0 %773, %v700
    %v775 = vpop.permute.xlu0 %774
    %778 = vset.pattern.permute.xlu0 0
    %779 = vperm.xlu0 %778, %v701
    %v780 = vpop.permute.xlu0 %779
    %783 = vset.pattern.permute.xlu0 0
    %784 = vperm.xlu0 %783, %v702
    %v785 = vpop.permute.xlu0 %784
    %788 = vset.pattern.permute.xlu0 0
    %789 = vperm.xlu0 %788, %v703
    %v790 = vpop.permute.xlu0 %789
    %v792 = vadd.f32 %v744, %v755
    %v793 = vadd.f32 %v745, %v760
    %v794 = vadd.f32 %v746, %v765
    %v795 = vadd.f32 %v747, %v770
    %v796 = vadd.f32 %v748, %v775
    %v797 = vadd.f32 %v749, %v780
    %v798 = vadd.f32 %v750, %v785
    %v799 = vadd.f32 %v751, %v790
    %v800 = vmul.f32 %v792, 0.2
    %v801 = vmul.f32 %v793, 0.2
    %v802 = vmul.f32 %v794, 0.2
    %v803 = vmul.f32 %v795, 0.2
    %v804 = vmul.f32 %v796, 0.2
    %v805 = vmul.f32 %v797, 0.2
    %v806 = vmul.f32 %v798, 0.2
    %v807 = vmul.f32 %v799, 0.2
    %v808 = vmax.f32 %v792, %v800
    %v809 = vmax.f32 %v793, %v801
    %v810 = vmax.f32 %v794, %v802
    %v811 = vmax.f32 %v795, %v803
    %v812 = vmax.f32 %v796, %v804
    %v813 = vmax.f32 %v797, %v805
    %v814 = vmax.f32 %v798, %v806
    %v815 = vmax.f32 %v799, %v807
    %v816 = vld [vmem:[%s5] sm:$0xff]
    %v817 = vld [vmem:[%s5 + $0x8] sm:$0xff]
    %v818 = vld [vmem:[%s5 + $0x10] sm:$0xff]
    %v819 = vld [vmem:[%s5 + $0x18] sm:$0xff]
    %v820 = vld [vmem:[%s5 + $0x20] sm:$0xff]
    %v821 = vld [vmem:[%s5 + $0x28] sm:$0xff]
    %v822 = vld [vmem:[%s5 + $0x30] sm:$0xff]
    %v823 = vld [vmem:[%s5 + $0x38] sm:$0xff]
    %v824 = vmul.f32 %v808, %v816
    %v825 = vmul.f32 %v809, %v817
    %v826 = vmul.f32 %v810, %v818
    %v827 = vmul.f32 %v811, %v819
    %v828 = vmul.f32 %v812, %v820
    %v829 = vmul.f32 %v813, %v821
    %v830 = vmul.f32 %v814, %v822
    %v831 = vmul.f32 %v815, %v823
    %v832 = vsel %vm558, %v824, 0.0
    %v833 = vsel %vm558, %v825, 0.0
    %v834 = vadd.f32 %v832, %v833
    %v835 = vsel %vm558, %v826, 0.0
    %v836 = vadd.f32 %v834, %v835
    %v837 = vsel %vm558, %v827, 0.0
    %v838 = vadd.f32 %v836, %v837
    %v839 = vsel %vm558, %v828, 0.0
    %v840 = vadd.f32 %v838, %v839
    %v841 = vsel %vm558, %v829, 0.0
    %v842 = vadd.f32 %v840, %v841
    %v843 = vsel %vm558, %v830, 0.0
    %v844 = vadd.f32 %v842, %v843
    %v845 = vsel %vm558, %v831, 0.0
    %v846 = vadd.f32 %v844, %v845
    %v847 = vrot.slane %v846, 4
    %v848 = vadd.f32 %v846, %v847
    %v849 = vrot.slane %v848, 2
    %v850 = vadd.f32 %v848, %v849
    %v851 = vrot.slane %v850, 1
    %v852 = vadd.f32 %v850, %v851
    %v853 = vld [vmem:[%s6] sm:$0xff]
    %v854 = vld [vmem:[%s6 + $0x8] sm:$0xff]
    %v855 = vld [vmem:[%s6 + $0x10] sm:$0xff]
    %v856 = vld [vmem:[%s6 + $0x18] sm:$0xff]
    %v858 = vsel %vm558, %v852, 0
    %860 = vmatprep.subr.mxu0 0.0
    %861 = vmatpush1.msra.mxu0 0.0
    %862 = vmatprep.subr.mxu0 0.0
    %863 = vmatpush1.msra.mxu0 0.0
    %864 = vmatprep.subr.mxu0 0.0
    %865 = vmatpush1.msra.mxu0 0.0
    %866 = vmatprep.subr.mxu0 0.0
    %867 = vmatpush1.msra.mxu0 0.0
    %868 = vmatprep.subr.mxu0 0.0
    %869 = vmatpush1.msra.mxu0 0.0
    %870 = vmatprep.subr.mxu0 0.0
    %871 = vmatpush1.msra.mxu0 0.0
    %872 = vmatprep.subr.mxu0 0.0
    %873 = vmatpush1.msra.mxu0 0.0
    %874 = vmatprep.subr.mxu0 0.0
    %875 = vmatpush1.msra.mxu0 0.0
    %876 = vmatprep.subr.mxu0 0.0
    %877 = vmatpush1.msra.mxu0 0.0
    %878 = vmatprep.subr.mxu0 0.0
    %879 = vmatpush1.msra.mxu0 0.0
    %880 = vmatprep.subr.mxu0 0.0
    %881 = vmatpush1.msra.mxu0 0.0
    %882 = vmatprep.subr.mxu0 0.0
    %883 = vmatpush1.msra.mxu0 0.0
    %884 = vmatprep.subr.mxu0 0.0
    %885 = vmatpush1.msra.mxu0 %v856
    %886 = vmatprep.subr.mxu0 0.0
    %887 = vmatpush1.msra.mxu0 %v855
    %888 = vmatprep.subr.mxu0 0.0
    %889 = vmatpush1.msra.mxu0 %v854
    %890 = vmatprep.subr.mxu0 0.0
    %891 = vmatpush1.msra.mxu0 %v853
    %892 = vmatprep.subr.mxu0 0.0
    %893 = vmatpush2.msra.mxu0 0.0
    %894 = vmatprep.subr.mxu0 0.0
    %895 = vmatpush2.msra.mxu0 0.0
    %896 = vmatprep.subr.mxu0 0.0
    %897 = vmatpush2.msra.mxu0 0.0
    %898 = vmatprep.subr.mxu0 0.0
    %899 = vmatpush2.msra.mxu0 0.0
    %900 = vmatprep.subr.mxu0 0.0
    %901 = vmatpush2.msra.mxu0 0.0
    %902 = vmatprep.subr.mxu0 0.0
    %903 = vmatpush2.msra.mxu0 0.0
    %904 = vmatprep.subr.mxu0 0.0
    %905 = vmatpush2.msra.mxu0 0.0
    %906 = vmatprep.subr.mxu0 0.0
    %907 = vmatpush2.msra.mxu0 0.0
    %908 = vmatprep.subr.mxu0 0.0
    %909 = vmatpush2.msra.mxu0 0.0
    %910 = vmatprep.subr.mxu0 0.0
    %911 = vmatpush2.msra.mxu0 0.0
    %912 = vmatprep.subr.mxu0 0.0
    %913 = vmatpush2.msra.mxu0 0.0
    %914 = vmatprep.subr.mxu0 0.0
    %915 = vmatpush2.msra.mxu0 0.0
    %916 = vmatprep.subr.mxu0 0.0
    %917 = vmatpush2.msra.mxu0 0.0
    %918 = vmatprep.subr.mxu0 0.0
    %919 = vmatpush2.msra.mxu0 0.0
    %920 = vmatprep.subr.mxu0 0.0
    %921 = vmatpush2.msra.mxu0 0.0
    %922 = vmatprep.subr.mxu0 0.0
    %923 = vmatpush2.msra.mxu0 0.0
    %924 = vmatprep.mubr.f32.mxu0 0.0
    %925 = vmatmul.mubr.f32.gmra.mxu0 %v858
    %v926 = vpop.f32.mrf.mxu0
    %v927 = vadd.f32 0.0, %v926
    %v928 = vpop.f32.mrf.mxu0
    %929 = vdwg.mxu0
    %vm930 = vcmask 8192
    %931 = vst.msk [vmem:[#allocation2] sm:$0x1] %vm930, %v927
    // Predicated region
    $region30: #{discriminator_forward.7} parent=1 // pred_check
      _
    $region31: #{discriminator_forward.7} parent=1 // pred_check_branch
      %933 = sbr.rel (0) target = $region33
    $region32: #{discriminator_forward.7} parent=1 // pred_region
      %s935 = ssub.s32 16, 16
      %936 = vsyncadd [#allocation3], %s935
      %s938 = sshll.u32 [#allocation2], 4
      %s939 = int_to_ptr.vmem [resolvable:$true] %s938
      %941 = dma.vmem_to_hbm [thread:$0]  %s939, 16, %s7, [#allocation3]
    $region33: #{discriminator_forward.7} parent=1 // pred_fallthru
      _
    // Predicated region
    $region34: #{discriminator_forward.7} parent=1 // pred_check
      _
    $region35: #{discriminator_forward.7} parent=1 // pred_check_branch
      %943 = sbr.rel (0) target = $region37
    $region36: #{discriminator_forward.7} parent=1 // pred_region
      %944 = dma.done [#allocation3], 16
    $region37: #{discriminator_forward.7} parent=1 // pred_fallthru
      _
    %945 = vsyncpa [#allocation3], 1

</llo_original>
